<compile_context>
chip_gen: v5e
topology: v5e:2x2
jax: 0.10.0
libtpu: 0.0.40
codegen_flags: <defaults>
</compile_context>

<pallas_src>
import functools

import jax
import jax.numpy as jnp
from jax.experimental import pallas as pl
from jax.experimental.pallas import tpu as pltpu

EPS = 1e-5           # torch.nn.BatchNorm2d default eps
LANE = 128           # TPU lane width


def _round_up(x, m):
    return (x + m - 1) // m * m


@functools.lru_cache(maxsize=None)
def _vmem_capacity():
    try:
        return int(pltpu.get_tpu_info().vmem_capacity_bytes)
    except Exception:
        return 64 << 20                     # conservative fallback (v7x-sized VMEM)


def _vmem_tile_budget():
    # Generation-aware double-buffered tile budget: aggressive on 128 MiB parts
    # (v5e/v6e), conservative on 64 MiB v7x.
    return (40 << 20) if _vmem_capacity() >= (96 << 20) else (16 << 20)


def _vmem_limit(byte_sum):
    return int(min(_vmem_capacity(), byte_sum + (16 << 20)))


# --------------------------------------------------------------------------
# Pallas kernels
# --------------------------------------------------------------------------
def _write_stats(acc, st_ref):
    # Per-tile partial BN statistics: row 0 = sum, row 1 = sum of squares.
    s = jnp.sum(acc, axis=0, keepdims=True)             # (1, C_pad)
    sq = jnp.sum(acc * acc, axis=0, keepdims=True)      # (1, C_pad)
    st_ref[...] = jnp.concatenate([s, sq], axis=0)[None]


def _stats_kernel(x_ref, w_ref, st_ref):
    """Pass 1 (recompute path): im2col matmul -> per-tile BN partial stats only."""
    acc = jnp.dot(x_ref[...], w_ref[...], preferred_element_type=jnp.float32)
    _write_stats(acc, st_ref)


def _conv_stats_kernel(x_ref, w_ref, o_ref, st_ref):
    """Pass 1 (materialized path): conv tile (bf16 out) + per-tile BN stats."""
    acc = jnp.dot(x_ref[...], w_ref[...], preferred_element_type=jnp.float32)
    o_ref[...] = acc.astype(o_ref.dtype)
    _write_stats(acc, st_ref)


def _bn_epilogue(y, rest, *, cout, apply_relu, has_residual, post_relu):
    """Shared pass-2 tail: slice to true cout, ReLU, residual add, trailing ReLU."""
    if has_residual:
        res_ref, o_ref = rest
    else:
        (o_ref,) = rest
    y = y[:, :cout]                              # drop lane padding before the store
    if apply_relu:                               # conv's own activation (pre-residual)
        y = jnp.maximum(y, 0.0)
    if has_residual:                             # x += l_in  (PyTorch residual block)
        y = y + res_ref[...].astype(jnp.float32)
    if post_relu:                                # fused standalone ('relu',) layer
        y = jnp.maximum(y, 0.0)
    o_ref[...] = y.astype(o_ref.dtype)


def _recompute_bn_act_kernel(x_ref, w_ref, scale_ref, shift_ref, *rest,
                             cout, apply_relu, has_residual, post_relu):
    """Pass 2 (recompute path): redo the MXU matmul, folded BN apply + epilogue."""
    acc = jnp.dot(x_ref[...], w_ref[...], preferred_element_type=jnp.float32)
    y = acc * scale_ref[...] + shift_ref[...]
    _bn_epilogue(y, rest, cout=cout, apply_relu=apply_relu,
                 has_residual=has_residual, post_relu=post_relu)


def _bn_act_kernel(acc_ref, scale_ref, shift_ref, *rest,
                   cout, apply_relu, has_residual, post_relu):
    """Pass 2 (materialized path): stream the bf16 conv tile, folded BN + epilogue."""
    y = acc_ref[...].astype(jnp.float32) * scale_ref[...] + shift_ref[...]
    _bn_epilogue(y, rest, cout=cout, apply_relu=apply_relu,
                 has_residual=has_residual, post_relu=post_relu)


def _relu_kernel(x_ref, o_ref):
    o_ref[...] = jnp.maximum(x_ref[...], 0.0)


# --------------------------------------------------------------------------
# Wrappers (glue: padding, im2col, reshapes)
# --------------------------------------------------------------------------
def _im2col(x_nhwc, ksize, stride, pad):
    """bf16 im2col with the K lane-padding folded into the concatenate."""
    x = x_nhwc.astype(jnp.bfloat16)
    N, H, W, C = x.shape
    xp = jnp.pad(x, ((0, 0), (pad, pad), (pad, pad), (0, 0)))
    Ho = (H + 2 * pad - ksize) // stride + 1
    Wo = (W + 2 * pad - ksize) // stride + 1
    cols = []
    for kh in range(ksize):
        for kw in range(ksize):
            cols.append(xp[:, kh:kh + stride * Ho:stride,
                           kw:kw + stride * Wo:stride, :])
    K = ksize * ksize * C
    k_pad = _round_up(K, LANE)
    if k_pad > K:      # fold the lane padding into the concat (no extra pad copy)
        cols.append(jnp.zeros((N, Ho, Wo, k_pad - K), jnp.bfloat16))
    patches = jnp.concatenate(cols, axis=-1)             # (N, Ho, Wo, k_pad)
    return patches.reshape(N * Ho * Wo, k_pad), K, (N, Ho, Wo)


def _pick_pass2_tile(m_pad, n_tiles1, tile_m1, row_bytes, budget):
    """Pass-2 (materialized path) M tile: no resident weights, so take the
    largest multiple of the pass-1 tile that fits the budget while keeping
    >= 2 tiles (when possible) for v7x megacore sharding."""
    min_tiles = min(2, n_tiles1)
    tile_m2, n_tiles2 = tile_m1, n_tiles1
    for k in range(2, n_tiles1 + 1):
        if n_tiles1 % k:
            continue
        if n_tiles1 // k < min_tiles:
            continue
        if 2 * (tile_m1 * k) * row_bytes <= budget:
            tile_m2, n_tiles2 = tile_m1 * k, n_tiles1 // k
    return tile_m2, n_tiles2


def conv_bn_act(x_nhwc, w, b, g, be, *, ksize, stride, pad,
                apply_relu, residual=None, post_relu=False):
    del b   # conv bias is exactly cancelled by the BatchNorm mean subtraction.

    cols, K, (N, Ho, Wo) = _im2col(x_nhwc, ksize, stride, pad)
    M, k_pad = cols.shape
    cout = w.shape[3]
    c_pad = _round_up(cout, LANE)
    has_residual = residual is not None

    # Recompute-vs-roundtrip gate: re-doing the bf16 matmul in pass 2 costs an
    # extra 2*k_pad B/row of cols reads; materializing a bf16 conv intermediate
    # costs 4*c_pad B/row (write + read).  The MXU has plenty of slack here.
    recompute = 2 * k_pad < 4 * c_pad

    w2 = jnp.pad(w.reshape(K, cout).astype(jnp.bfloat16),
                 ((0, k_pad - K), (0, c_pad - cout)))
    wbytes = k_pad * c_pad * 2                     # bf16 weights (double-buffered)

    # --- pass-1 M tile, budgeted against generation-aware VMEM ---------------
    budget = _vmem_tile_budget()
    row1 = k_pad * 2 + (0 if recompute else c_pad * 2)
    avail1 = budget - 2 * wbytes
    tile_m = 8
    for t in (2048, 1024, 512, 256, 128, 64, 32, 16, 8):
        if 2 * t * row1 <= avail1:
            tile_m = t
            break
    # Keep >= 2 M tiles so dimension_semantics=("parallel",) can shard across
    # both v7x TensorCores (no effect on single-TC v5e/v6e).
    max_tile = max(8, _round_up((M + 1) // 2, 8))
    tile_m = max(8, min(tile_m, max_tile, _round_up(M, 8)))
    m_pad = _round_up(M, tile_m)
    n_tiles = m_pad // tile_m

    cols_p = jnp.pad(cols, ((0, m_pad - M), (0, 0))) if m_pad > M else cols

    cols_spec = pl.BlockSpec((tile_m, k_pad), lambda i: (i, 0))
    w_spec = pl.BlockSpec((k_pad, c_pad), lambda i: (0, 0))
    stats_shape = jax.ShapeDtypeStruct((n_tiles, 2, c_pad), jnp.float32)
    stats_spec = pl.BlockSpec((1, 2, c_pad), lambda i: (i, 0, 0))
    cparams1 = pltpu.CompilerParams(
        dimension_semantics=("parallel",),
        vmem_limit_bytes=_vmem_limit(2 * tile_m * row1 + 2 * wbytes
                                     + 8 * c_pad * 4))

    # ---- pass 1: conv matmul -> per-tile per-channel BN statistics ----------
    if recompute:
        part_stats = pl.pallas_call(
            _stats_kernel,
            out_shape=stats_shape,
            grid=(n_tiles,),
            in_specs=[cols_spec, w_spec],
            out_specs=stats_spec,
            compiler_params=cparams1,
        )(cols_p, w2)
        conv_out = None
    else:
        conv_out, part_stats = pl.pallas_call(
            _conv_stats_kernel,
            out_shape=(jax.ShapeDtypeStruct((m_pad, c_pad), jnp.bfloat16),
                       stats_shape),
            grid=(n_tiles,),
            in_specs=[cols_spec, w_spec],
            out_specs=(pl.BlockSpec((tile_m, c_pad), lambda i: (i, 0)),
                       stats_spec),
            compiler_params=cparams1,
        )(cols_p, w2)

    # ---- tiny cross-tile reduction + folded BN scale/shift (XLA, negligible).
    # NOTE: one-pass var = E[x^2] - E[x]^2 in f32; fine while |mean|/std stays
    # O(1..100).  TODO(synk): per-tile shifted sums if deeper nets push it.
    sums = jnp.sum(part_stats[:, 0, :], axis=0)
    sqs = jnp.sum(part_stats[:, 1, :], axis=0)
    mean = sums / M
    var = jnp.maximum(sqs / M - mean * mean, 0.0)
    g_p = jnp.pad(g, (0, c_pad - cout))
    be_p = jnp.pad(be, (0, c_pad - cout))
    scale_v = g_p * jax.lax.rsqrt(var + EPS)
    shift_v = be_p - mean * scale_v
    scale = scale_v.reshape(1, c_pad)
    shift = shift_v.reshape(1, c_pad)

    # ---- pass 2: (re)compute conv tile, apply BN + ReLU + residual ----------
    ss_specs = [pl.BlockSpec((1, c_pad), lambda i: (0, 0)),
                pl.BlockSpec((1, c_pad), lambda i: (0, 0))]
    res_bytes = cout * 2 if has_residual else 0
    if recompute:
        tile_m2, n_tiles2 = tile_m, n_tiles        # same footprint as pass 1
        inputs = [cols_p, w2, scale, shift]
        in_specs = [cols_spec, w_spec] + ss_specs
        kernel = functools.partial(
            _recompute_bn_act_kernel, cout=cout, apply_relu=apply_relu,
            has_residual=has_residual, post_relu=post_relu)
        byte_sum2 = 2 * tile_m2 * (k_pad * 2 + res_bytes + cout * 2) + 2 * wbytes
    else:
        # Light streaming epilogue: no resident weights -> larger M tile.
        row2 = c_pad * 2 + res_bytes + cout * 2
        tile_m2, n_tiles2 = _pick_pass2_tile(m_pad, n_tiles, tile_m, row2, budget)
        inputs = [conv_out, scale, shift]
        in_specs = [pl.BlockSpec((tile_m2, c_pad), lambda i: (i, 0))] + ss_specs
        kernel = functools.partial(
            _bn_act_kernel, cout=cout, apply_relu=apply_relu,
            has_residual=has_residual, post_relu=post_relu)
        byte_sum2 = 2 * tile_m2 * row2

    if has_residual:
        # Residual in its native bf16 dtype and true channel width (no f32
        # cast, no 128-lane padding).
        res2 = residual.astype(jnp.bfloat16).reshape(M, cout)
        if m_pad > M:
            res2 = jnp.pad(res2, ((0, m_pad - M), (0, 0)))
        inputs.append(res2)
        in_specs.append(pl.BlockSpec((tile_m2, cout), lambda i: (i, 0)))

    out = pl.pallas_call(
        kernel,
        out_shape=jax.ShapeDtypeStruct((m_pad, cout), jnp.bfloat16),
        grid=(n_tiles2,),
        in_specs=in_specs,
        out_specs=pl.BlockSpec((tile_m2, cout), lambda i: (i, 0)),
        compiler_params=pltpu.CompilerParams(
            dimension_semantics=("parallel",),
            vmem_limit_bytes=_vmem_limit(byte_sum2 + 4 * c_pad * 4)),
    )(*inputs)

    if m_pad > M:
        out = out[:M]
    return out.reshape(N, Ho, Wo, cout)


def relu_op(x_nhwc):
    """Fallback standalone ReLU (only hit if a ('relu',) cannot be fused).
    Presents a lane-dense (rows, 128) view so all stores are unmasked."""
    shape, dtype = x_nhwc.shape, x_nhwc.dtype
    n = x_nhwc.size
    tile_r = 512
    n_pad = _round_up(n, tile_r * LANE)
    flat = jnp.pad(x_nhwc.reshape(-1), (0, n_pad - n))
    x2 = flat.reshape(-1, LANE)
    rows = x2.shape[0]
    out = pl.pallas_call(
        _relu_kernel,
        out_shape=jax.ShapeDtypeStruct((rows, LANE), dtype),
        grid=(rows // tile_r,),
        in_specs=[pl.BlockSpec((tile_r, LANE), lambda i: (i, 0))],
        out_specs=pl.BlockSpec((tile_r, LANE), lambda i: (i, 0)),
        compiler_params=pltpu.CompilerParams(dimension_semantics=("parallel",)),
    )(x2)
    return out.reshape(-1)[:n].reshape(shape)


# --------------------------------------------------------------------------
# ResModelNd: deterministic params + forward (mirrors the PyTorch module)
# --------------------------------------------------------------------------
def init_params(key, n_channel, cnn_config):
    params = {}
    c = n_channel

    def conv_params(k, cin, cout, f):
        k1, k2, k3, k4 = jax.random.split(k, 4)
        w = 0.1 * jax.random.normal(k1, (f, f, cin, cout), jnp.float32)  # HWIO
        b = 0.1 * jax.random.normal(k2, (cout,), jnp.float32)  # unused: BN cancels it
        g = 1.0 + 0.1 * jax.random.normal(k3, (cout,), jnp.float32)      # BN gamma
        be = 0.1 * jax.random.normal(k4, (cout,), jnp.float32)           # BN beta
        return (w, b, g, be)

    for li, layer in enumerate(cnn_config):
        sub = layer if isinstance(layer, list) else [layer]
        for i, l in enumerate(sub):
            if l[0] == 'conv':
                _, cout, f, s, p, act = l
                key, sk = jax.random.split(key)
                params['l{}_{}'.format(li, i)] = conv_params(sk, c, cout, f)
                c = cout
    return params


def res_model_forward(x_nchw, params, cnn_config):
    # NCHW -> NHWC; activations are stored in bf16 between layers (the MXU
    # consumes bf16 anyway; halves activation HBM traffic).
    x = jnp.transpose(x_nchw, (0, 2, 3, 1)).astype(jnp.bfloat16)
    idx = 0
    while idx < len(cnn_config):
        layer = cnn_config[idx]
        nxt = cnn_config[idx + 1] if idx + 1 < len(cnn_config) else None
        # Fuse a following standalone ('relu',) into this conv layer's epilogue.
        fuse_next_relu = (nxt is not None and not isinstance(nxt, list)
                          and nxt[0] == 'relu'
                          and (isinstance(layer, list) or layer[0] == 'conv'))

        if isinstance(layer, list):                      # residual block: x += l_in
            l_in = x
            for i, l in enumerate(layer):
                assert l[0] == 'conv'
                _, cout, f, s, p, act = l
                is_last = (i == len(layer) - 1)
                x = conv_bn_act(x, *params['l{}_{}'.format(idx, i)],
                                ksize=f, stride=s, pad=p,
                                apply_relu=(act == 'relu'),
                                residual=(l_in if is_last else None),
                                post_relu=(fuse_next_relu and is_last))
        elif layer[0] == 'conv':
            _, cout, f, s, p, act = layer
            x = conv_bn_act(x, *params['l{}_0'.format(idx)],
                            ksize=f, stride=s, pad=p,
                            apply_relu=(act == 'relu'),
                            post_relu=fuse_next_relu)
        elif layer[0] == 'relu':
            x = relu_op(x)
        else:
            # TODO(synk): 'maxpool' layers exist in the PyTorch module but are not
            # exercised by this config; not implemented here.
            raise NotImplementedError(layer[0])
        idx += 2 if fuse_next_relu else 1
    return jnp.transpose(x, (0, 3, 1, 2)).astype(jnp.float32)   # back to NCHW


# --------------------------------------------------------------------------
# Pure-JAX reference (same mixed-precision policy: bf16 conv inputs, f32 conv
# accumulation / BN / residual math, bf16 activation storage between layers).
# --------------------------------------------------------------------------
def ref_forward(x_nchw, params, cnn_config):
    x = jnp.transpose(x_nchw, (0, 2, 3, 1)).astype(jnp.bfloat16)

    def conv_bn(x, p, f, s, pad, relu):
        w, b, g, be = p
        y = jax.lax.conv_general_dilated(
            x.astype(jnp.bfloat16), w.astype(jnp.bfloat16), (s, s),
            [(pad, pad), (pad, pad)],
            dimension_numbers=('NHWC', 'HWIO', 'NHWC'),
            preferred_element_type=jnp.float32) + b
        m = jnp.mean(y, axis=(0, 1, 2), keepdims=True)
        v = jnp.mean((y - m) ** 2, axis=(0, 1, 2), keepdims=True)
        y = (y - m) * jax.lax.rsqrt(v + EPS) * g + be
        return jnp.maximum(y, 0.0) if relu else y

    for li, layer in enumerate(cnn_config):
        if isinstance(layer, list):
            l_in = x
            for i, l in enumerate(layer):
                _, cout, f, s, p, act = l
                y = conv_bn(x, params['l{}_{}'.format(li, i)], f, s, p,
                            act == 'relu')                          # f32
                x = y if i == len(layer) - 1 else y.astype(jnp.bfloat16)
            x = (x + l_in.astype(jnp.float32)).astype(jnp.bfloat16)
        elif layer[0] == 'conv':
            _, cout, f, s, p, act = layer
            x = conv_bn(x, params['l{}_0'.format(li)], f, s, p,
                        act == 'relu').astype(jnp.bfloat16)
        elif layer[0] == 'relu':
            x = jnp.maximum(x, 0.0)
    return jnp.transpose(x, (0, 3, 1, 2)).astype(jnp.float32)


# --------------------------------------------------------------------------
if __name__ == "__main__":
    key = jax.random.PRNGKey(0)
    kx, kp = jax.random.split(key)

    N, C, H, W = 2, 4, 16, 16
    x = jax.random.normal(kx, (N, C, H, W), jnp.float32)   # NCHW, like PyTorch

    # ResModelNd(nChannel=4, dims=(16, 16), cnn_config=...)
    cnn_config = [
        ('conv', 8, 3, 1, 1, 'relu'),                       # conv-bn-relu
        [('conv', 8, 3, 1, 1, 'relu'),
         ('conv', 8, 3, 1, 1, 'linear')],                   # residual block: x += l_in
        ('relu',),                                          # standalone relu (fused)
    ]
    params = init_params(kp, C, cnn_config)

    fwd = jax.jit(functools.partial(res_model_forward, cnn_config=cnn_config))
    out = jax.block_until_ready(fwd(x, params))

    assert out.shape == (N, 8, H, W), out.shape
    ref = jax.block_until_ready(ref_forward(x, params, cnn_config))
    if not jnp.allclose(out, ref, atol=2e-2, rtol=2e-2):
        err = float(jnp.max(jnp.abs(out - ref)))
        raise AssertionError(
            "Pallas output mismatch vs reference (max abs err %.3e)" % err)

    print("KERNEL_OK")
</pallas_src>

<mosaic_0001>
module attributes {stable_mosaic.version = 11 : i64} {
  func.func @_recompute_bn_act_kernel(%arg0: i32, %arg1: memref<256x128xbf16, #tpu.memory_space<vmem>>, %arg2: memref<128x128xbf16, #tpu.memory_space<vmem>>, %arg3: memref<1x128xf32, #tpu.memory_space<vmem>>, %arg4: memref<1x128xf32, #tpu.memory_space<vmem>>, %arg5: memref<256x8xbf16, #tpu.memory_space<vmem>>) attributes {dimension_semantics = [#tpu.dimension_semantics<parallel>], iteration_bounds = array<i64: 2>, scalar_prefetch = 0 : i64, scratch_operands = 0 : i64, tpu.core_type = #tpu.core_type<tc>, window_params = [{transform_indices = @transform_0, window_bounds = array<i64: 256, 128>}, {pipeline_mode = #tpu.pipeline_mode<synchronous>, transform_indices = @transform_1, window_bounds = array<i64: 128, 128>}, {pipeline_mode = #tpu.pipeline_mode<synchronous>, transform_indices = @transform_2, window_bounds = array<i64: 1, 128>}, {pipeline_mode = #tpu.pipeline_mode<synchronous>, transform_indices = @transform_3, window_bounds = array<i64: 1, 128>}, {transform_indices = @transform_4, window_bounds = array<i64: 256, 8>}]} {
    %c0 = arith.constant 0 : index
    %c0_0 = arith.constant 0 : index
    %0 = vector.load %arg1[%c0, %c0_0] : memref<256x128xbf16, #tpu.memory_space<vmem>>, vector<256x128xbf16>
    %c0_1 = arith.constant 0 : index
    %c0_2 = arith.constant 0 : index
    %1 = vector.load %arg2[%c0_1, %c0_2] : memref<128x128xbf16, #tpu.memory_space<vmem>>, vector<128x128xbf16>
    %cst = arith.constant dense<0.000000e+00> : vector<256x128xf32>
    %2 = tpu.matmul %0, %1, %cst {dimension_numbers = #tpu.dot_dimension_numbers<[1], [0], [0], [1], [0, 0, 1, 1], [], []>} : vector<256x128xbf16>, vector<128x128xbf16>, vector<256x128xf32> -> vector<256x128xf32>
    %c0_3 = arith.constant 0 : index
    %c0_4 = arith.constant 0 : index
    %3 = vector.load %arg3[%c0_3, %c0_4] : memref<1x128xf32, #tpu.memory_space<vmem>>, vector<1x128xf32>
    %4 = vector.broadcast %3 : vector<1x128xf32> to vector<256x128xf32>
    %5 = arith.mulf %2, %4 : vector<256x128xf32>
    %c0_5 = arith.constant 0 : index
    %c0_6 = arith.constant 0 : index
    %6 = vector.load %arg4[%c0_5, %c0_6] : memref<1x128xf32, #tpu.memory_space<vmem>>, vector<1x128xf32>
    %7 = vector.broadcast %6 : vector<1x128xf32> to vector<256x128xf32>
    %8 = arith.addf %5, %7 : vector<256x128xf32>
    %9 = vector.extract_strided_slice %8 {offsets = [0, 0], sizes = [256, 8], strides = [1, 1]} : vector<256x128xf32> to vector<256x8xf32>
    %cst_7 = arith.constant 0.000000e+00 : f32
    %10 = vector.broadcast %cst_7 : f32 to vector<256x8xf32>
    %11 = arith.maximumf %9, %10 : vector<256x8xf32>
    %12 = arith.truncf %11 : vector<256x8xf32> to vector<256x8xbf16>
    %c0_8 = arith.constant 0 : index
    %c0_9 = arith.constant 0 : index
    %13 = vector.load %arg5[%c0_8, %c0_9] : memref<256x8xbf16, #tpu.memory_space<vmem>>, vector<256x8xbf16>
    tpu.vector_store %arg5[%c0_8, %c0_9], %12 {strides = array<i32>} : memref<256x8xbf16, #tpu.memory_space<vmem>>, vector<256x8xbf16>,
    return
  }
  func.func @transform_0(%arg0: i32) -> (i32, i32) {
    %c0_i32 = arith.constant 0 : i32
    %c0_i32_0 = arith.constant 0 : i32
    return %arg0, %c0_i32 : i32, i32
  }
  func.func @transform_1(%arg0: i32) -> (i32, i32) {
    %c0_i32 = arith.constant 0 : i32
    %c0_i32_0 = arith.constant 0 : i32
    %c0_i32_1 = arith.constant 0 : i32
    return %c0_i32, %c0_i32_0 : i32, i32
  }
  func.func @transform_2(%arg0: i32) -> (i32, i32) {
    %c0_i32 = arith.constant 0 : i32
    %c0_i32_0 = arith.constant 0 : i32
    %c0_i32_1 = arith.constant 0 : i32
    return %c0_i32, %c0_i32_0 : i32, i32
  }
  func.func @transform_3(%arg0: i32) -> (i32, i32) {
    %c0_i32 = arith.constant 0 : i32
    %c0_i32_0 = arith.constant 0 : i32
    %c0_i32_1 = arith.constant 0 : i32
    return %c0_i32, %c0_i32_0 : i32, i32
  }
  func.func @transform_4(%arg0: i32) -> (i32, i32) {
    %c0_i32 = arith.constant 0 : i32
    %c0_i32_0 = arith.constant 0 : i32
    return %arg0, %c0_i32 : i32, i32
  }
}

module attributes {stable_mosaic.version = 11 : i64} {
  func.func @_stats_kernel(%arg0: i32, %arg1: memref<256x128xbf16, #tpu.memory_space<vmem>>, %arg2: memref<128x128xbf16, #tpu.memory_space<vmem>>, %arg3: memref<1x2x128xf32, #tpu.memory_space<vmem>>) attributes {dimension_semantics = [#tpu.dimension_semantics<parallel>], iteration_bounds = array<i64: 2>, scalar_prefetch = 0 : i64, scratch_operands = 0 : i64, tpu.core_type = #tpu.core_type<tc>, window_params = [{transform_indices = @transform_0, window_bounds = array<i64: 256, 128>}, {pipeline_mode = #tpu.pipeline_mode<synchronous>, transform_indices = @transform_1, window_bounds = array<i64: 128, 128>}, {transform_indices = @transform_2, window_bounds = array<i64: 1, 2, 128>}]} {
    %c0 = arith.constant 0 : index
    %c0_0 = arith.constant 0 : index
    %0 = vector.load %arg1[%c0, %c0_0] : memref<256x128xbf16, #tpu.memory_space<vmem>>, vector<256x128xbf16>
    %c0_1 = arith.constant 0 : index
    %c0_2 = arith.constant 0 : index
    %1 = vector.load %arg2[%c0_1, %c0_2] : memref<128x128xbf16, #tpu.memory_space<vmem>>, vector<128x128xbf16>
    %cst = arith.constant dense<0.000000e+00> : vector<256x128xf32>
    %2 = tpu.matmul %0, %1, %cst {dimension_numbers = #tpu.dot_dimension_numbers<[1], [0], [0], [1], [0, 0, 1, 1], [], []>} : vector<256x128xbf16>, vector<128x128xbf16>, vector<256x128xf32> -> vector<256x128xf32>
    %cst_3 = arith.constant dense<0.000000e+00> : vector<128xf32>
    %3 = vector.multi_reduction <add>, %2, %cst_3 [0] : vector<256x128xf32> to vector<128xf32>
    %4 = vector.shape_cast %3 : vector<128xf32> to vector<1x128xf32>
    %5 = arith.mulf %2, %2 : vector<256x128xf32>
    %cst_4 = arith.constant dense<0.000000e+00> : vector<128xf32>
    %6 = vector.multi_reduction <add>, %5, %cst_4 [0] : vector<256x128xf32> to vector<128xf32>
    %7 = vector.shape_cast %6 : vector<128xf32> to vector<1x128xf32>
    %8 = tpu.concatenate %4, %7 in 0 : vector<1x128xf32>, vector<1x128xf32> -> vector<2x128xf32>
    %9 = vector.shape_cast %8 : vector<2x128xf32> to vector<1x2x128xf32>
    %c0_5 = arith.constant 0 : index
    %c0_6 = arith.constant 0 : index
    %c0_7 = arith.constant 0 : index
    %10 = vector.load %arg3[%c0_5, %c0_6, %c0_7] : memref<1x2x128xf32, #tpu.memory_space<vmem>>, vector<1x2x128xf32>
    tpu.vector_store %arg3[%c0_5, %c0_6, %c0_7], %9 {strides = array<i32>} : memref<1x2x128xf32, #tpu.memory_space<vmem>>, vector<1x2x128xf32>,
    return
  }
  func.func @transform_0(%arg0: i32) -> (i32, i32) {
    %c0_i32 = arith.constant 0 : i32
    %c0_i32_0 = arith.constant 0 : i32
    return %arg0, %c0_i32 : i32, i32
  }
  func.func @transform_1(%arg0: i32) -> (i32, i32) {
    %c0_i32 = arith.constant 0 : i32
    %c0_i32_0 = arith.constant 0 : i32
    %c0_i32_1 = arith.constant 0 : i32
    return %c0_i32, %c0_i32_0 : i32, i32
  }
  func.func @transform_2(%arg0: i32) -> (i32, i32, i32) {
    %c0_i32 = arith.constant 0 : i32
    %c0_i32_0 = arith.constant 0 : i32
    %c0_i32_1 = arith.constant 0 : i32
    return %arg0, %c0_i32, %c0_i32_0 : i32, i32, i32
  }
}

module attributes {stable_mosaic.version = 11 : i64} {
  func.func @_recompute_bn_act_kernel(%arg0: i32, %arg1: memref<256x128xbf16, #tpu.memory_space<vmem>>, %arg2: memref<128x128xbf16, #tpu.memory_space<vmem>>, %arg3: memref<1x128xf32, #tpu.memory_space<vmem>>, %arg4: memref<1x128xf32, #tpu.memory_space<vmem>>, %arg5: memref<256x8xbf16, #tpu.memory_space<vmem>>, %arg6: memref<256x8xbf16, #tpu.memory_space<vmem>>) attributes {dimension_semantics = [#tpu.dimension_semantics<parallel>], iteration_bounds = array<i64: 2>, scalar_prefetch = 0 : i64, scratch_operands = 0 : i64, tpu.core_type = #tpu.core_type<tc>, window_params = [{transform_indices = @transform_0, window_bounds = array<i64: 256, 128>}, {pipeline_mode = #tpu.pipeline_mode<synchronous>, transform_indices = @transform_1, window_bounds = array<i64: 128, 128>}, {pipeline_mode = #tpu.pipeline_mode<synchronous>, transform_indices = @transform_2, window_bounds = array<i64: 1, 128>}, {pipeline_mode = #tpu.pipeline_mode<synchronous>, transform_indices = @transform_3, window_bounds = array<i64: 1, 128>}, {transform_indices = @transform_4, window_bounds = array<i64: 256, 8>}, {transform_indices = @transform_5, window_bounds = array<i64: 256, 8>}]} {
    %c0 = arith.constant 0 : index
    %c0_0 = arith.constant 0 : index
    %0 = vector.load %arg1[%c0, %c0_0] : memref<256x128xbf16, #tpu.memory_space<vmem>>, vector<256x128xbf16>
    %c0_1 = arith.constant 0 : index
    %c0_2 = arith.constant 0 : index
    %1 = vector.load %arg2[%c0_1, %c0_2] : memref<128x128xbf16, #tpu.memory_space<vmem>>, vector<128x128xbf16>
    %cst = arith.constant dense<0.000000e+00> : vector<256x128xf32>
    %2 = tpu.matmul %0, %1, %cst {dimension_numbers = #tpu.dot_dimension_numbers<[1], [0], [0], [1], [0, 0, 1, 1], [], []>} : vector<256x128xbf16>, vector<128x128xbf16>, vector<256x128xf32> -> vector<256x128xf32>
    %c0_3 = arith.constant 0 : index
    %c0_4 = arith.constant 0 : index
    %3 = vector.load %arg3[%c0_3, %c0_4] : memref<1x128xf32, #tpu.memory_space<vmem>>, vector<1x128xf32>
    %4 = vector.broadcast %3 : vector<1x128xf32> to vector<256x128xf32>
    %5 = arith.mulf %2, %4 : vector<256x128xf32>
    %c0_5 = arith.constant 0 : index
    %c0_6 = arith.constant 0 : index
    %6 = vector.load %arg4[%c0_5, %c0_6] : memref<1x128xf32, #tpu.memory_space<vmem>>, vector<1x128xf32>
    %7 = vector.broadcast %6 : vector<1x128xf32> to vector<256x128xf32>
    %8 = arith.addf %5, %7 : vector<256x128xf32>
    %9 = vector.extract_strided_slice %8 {offsets = [0, 0], sizes = [256, 8], strides = [1, 1]} : vector<256x128xf32> to vector<256x8xf32>
    %c0_7 = arith.constant 0 : index
    %c0_8 = arith.constant 0 : index
    %10 = vector.load %arg5[%c0_7, %c0_8] : memref<256x8xbf16, #tpu.memory_space<vmem>>, vector<256x8xbf16>
    %11 = arith.extf %10 : vector<256x8xbf16> to vector<256x8xf32>
    %12 = arith.addf %9, %11 : vector<256x8xf32>
    %cst_9 = arith.constant 0.000000e+00 : f32
    %13 = vector.broadcast %cst_9 : f32 to vector<256x8xf32>
    %14 = arith.maximumf %12, %13 : vector<256x8xf32>
    %15 = arith.truncf %14 : vector<256x8xf32> to vector<256x8xbf16>
    %c0_10 = arith.constant 0 : index
    %c0_11 = arith.constant 0 : index
    %16 = vector.load %arg6[%c0_10, %c0_11] : memref<256x8xbf16, #tpu.memory_space<vmem>>, vector<256x8xbf16>
    tpu.vector_store %arg6[%c0_10, %c0_11], %15 {strides = array<i32>} : memref<256x8xbf16, #tpu.memory_space<vmem>>, vector<256x8xbf16>,
    return
  }
  func.func @transform_0(%arg0: i32) -> (i32, i32) {
    %c0_i32 = arith.constant 0 : i32
    %c0_i32_0 = arith.constant 0 : i32
    return %arg0, %c0_i32 : i32, i32
  }
  func.func @transform_1(%arg0: i32) -> (i32, i32) {
    %c0_i32 = arith.constant 0 : i32
    %c0_i32_0 = arith.constant 0 : i32
    %c0_i32_1 = arith.constant 0 : i32
    return %c0_i32, %c0_i32_0 : i32, i32
  }
  func.func @transform_2(%arg0: i32) -> (i32, i32) {
    %c0_i32 = arith.constant 0 : i32
    %c0_i32_0 = arith.constant 0 : i32
    %c0_i32_1 = arith.constant 0 : i32
    return %c0_i32, %c0_i32_0 : i32, i32
  }
  func.func @transform_3(%arg0: i32) -> (i32, i32) {
    %c0_i32 = arith.constant 0 : i32
    %c0_i32_0 = arith.constant 0 : i32
    %c0_i32_1 = arith.constant 0 : i32
    return %c0_i32, %c0_i32_0 : i32, i32
  }
  func.func @transform_4(%arg0: i32) -> (i32, i32) {
    %c0_i32 = arith.constant 0 : i32
    %c0_i32_0 = arith.constant 0 : i32
    return %arg0, %c0_i32 : i32, i32
  }
  func.func @transform_5(%arg0: i32) -> (i32, i32) {
    %c0_i32 = arith.constant 0 : i32
    %c0_i32_0 = arith.constant 0 : i32
    return %arg0, %c0_i32 : i32, i32
  }
}

</mosaic_0001>

<llo_original>
// kernel: res_model_forward.6
$region0: #{res_model_forward.6}
  #allocation0 [shape = 'u32[]', space=smem, size = 0x4, offset = 0x4, fixed_abs, tag = 'smem constant byte address 0x4 - core index']
  #allocation1 [shape = 'u32[72,128]{1,0:T(1,128)}', space=vmem, size = 0x9000, scoped, tag = 'internal scratch']
  %s0 = inlined_call_operand.vmem [shape: bf16[512,128], index: 0, kind: input, shape index: {}]
  %s1 = inlined_call_operand.vmem [shape: bf16[128,128], index: 1, kind: input, shape index: {}]
  %s2 = inlined_call_operand.vmem [shape: f32[2,2,128], index: 2, kind: output, shape index: {}]
  %s3 = sld [smem:[#allocation0]]
  $region41: #{res_model_forward.6} parent=0
    _
  %s5 = ssub.s32 1, %s3
  %s6 = scalar_select 0, %s5, %s3
  loop: start=0, step=1, limit=4
  $region2: #{res_model_forward.6} parent=0 // loop_pre_header
    _
  $region3: #{res_model_forward.6} parent=0 // loop_header
    %s8 = sphi 0, %s12
    %p9 = scmp.ge.s32.totalorder %s8, 4
    %s18 = sphi 0, %s20
    %s21 = sphi 0, %s18
    %s22 = sphi 0, %s21
    %s38 = sphi 0, %s22
    %s42 = sphi 0, %s42
    %s44 = sphi 0, %s42
    %s45 = sphi 0, %s44
    %s59 = sphi 0, %s45
    %s65 = sphi 0, %s67
    %s68 = sphi 0, %s65
    %s69 = sphi 0, %s68
    %s85 = sphi 0, %s69
  $region4: #{res_model_forward.6} parent=0 // loop_header_branch
    %11 = sbr.rel (%p9) target = $region8
  $region5: #{res_model_forward.6} parent=0 // loop_body
    %s13 = ssub.s32 %s8, 1
    %s14 = ssub.s32 %s8, 2
    %s15 = sadd.s32 %s8, 1
    %s16 = ssub.s32 %s8, %s15
    %p17 = scmp.eq.s32.totalorder %s16, 0
    %s19 = sadd.s32 %s18, 1
    %s20 = scalar_select %p17, %s18, %s19
    %p23 = pneg %p17
    %p24 = scmp.eq.s32.totalorder %s8, 1
    %p25 = por %p23, %p24
    %p26 = scmp.ne.s32.totalorder %s18, %s21
    %p27 = scmp.eq.s32.totalorder %s8, 0
    %p28 = por %p26, %p27
    %p29 = scmp.ne.s32.totalorder %s18, %s21
    %p30 = scmp.eq.s32.totalorder %s13, 1
    %p31 = por %p29, %p30
    %p32 = scmp.ne.s32.totalorder %s21, %s22
    %p33 = scmp.eq.s32.totalorder %s13, 0
    %p34 = por %p32, %p33
    %p35 = scmp.ne.s32.totalorder %s21, %s22
    %p36 = scmp.eq.s32.totalorder %s14, 1
    %p37 = por %p35, %p36
    %p39 = scmp.ne.s32.totalorder %s22, %s38
    %p40 = scmp.eq.s32.totalorder %s14, 0
    %p41 = por %p39, %p40
    %s43 = sadd.s32 %s42, 1
    %p46 = scmp.eq.s32.totalorder %s8, 1
    %p47 = scmp.ne.s32.totalorder %s42, %s44
    %p48 = scmp.eq.s32.totalorder %s8, 0
    %p49 = por %p47, %p48
    %p50 = scmp.ne.s32.totalorder %s42, %s44
    %p51 = scmp.eq.s32.totalorder %s13, 1
    %p52 = por %p50, %p51
    %p53 = scmp.ne.s32.totalorder %s44, %s45
    %p54 = scmp.eq.s32.totalorder %s13, 0
    %p55 = por %p53, %p54
    %p56 = scmp.ne.s32.totalorder %s44, %s45
    %p57 = scmp.eq.s32.totalorder %s14, 1
    %p58 = por %p56, %p57
    %p60 = scmp.ne.s32.totalorder %s45, %s59
    %p61 = scmp.eq.s32.totalorder %s14, 0
    %p62 = por %p60, %p61
    %s63 = ssub.s32 %s8, %s15
    %p64 = scmp.eq.s32.totalorder %s63, 0
    %s66 = sadd.s32 %s65, 1
    %s67 = scalar_select %p64, %s65, %s66
    %p70 = pneg %p64
    %p71 = scmp.eq.s32.totalorder %s8, 1
    %p72 = por %p70, %p71
    %p73 = scmp.ne.s32.totalorder %s65, %s68
    %p74 = scmp.eq.s32.totalorder %s8, 0
    %p75 = por %p73, %p74
    %p76 = scmp.ne.s32.totalorder %s65, %s68
    %p77 = scmp.eq.s32.totalorder %s13, 1
    %p78 = por %p76, %p77
    %p79 = scmp.ne.s32.totalorder %s68, %s69
    %p80 = scmp.eq.s32.totalorder %s13, 0
    %p81 = por %p79, %p80
    %p82 = scmp.ne.s32.totalorder %s68, %s69
    %p83 = scmp.eq.s32.totalorder %s14, 1
    %p84 = por %p82, %p83
    %p86 = scmp.ne.s32.totalorder %s69, %s85
    %p87 = scmp.eq.s32.totalorder %s14, 0
    %p88 = por %p86, %p87
    %p89 = scmp.le.s32.totalorder 1, %s8
    %p90 = scmp.lt.s32.totalorder %s8, 3
    %p91 = pnand %p89, %p90
    %p92 = pneg %p91
    // Predicated region
    $region9: #{res_model_forward.6} parent=5 // pred_check
      _
    $region10: #{res_model_forward.6} parent=5 // pred_check_branch
      %94 = sbr.rel (%p91) target = $region12
    $region11: #{res_model_forward.6} parent=5 // pred_region
      %s95 = ssub.s32 %s8, 1
      // Predicated region
      $region13: #{res_model_forward.6} parent=11 // pred_check
        %p96 = pneg %p55
      $region14: #{res_model_forward.6} parent=11 // pred_check_branch
        %98 = sbr.rel (%p96) target = $region16
      $region15: #{res_model_forward.6} parent=11 // pred_region
        _
      $region16: #{res_model_forward.6} parent=11 // pred_fallthru
        _
    $region12: #{res_model_forward.6} parent=5 // pred_fallthru
      _
    %p99 = scmp.lt.s32.totalorder %s8, 2
    // Predicated region
    $region17: #{res_model_forward.6} parent=5 // pred_check
      %p100 = pneg %p99
    $region18: #{res_model_forward.6} parent=5 // pred_check_branch
      %102 = sbr.rel (%p100) target = $region20
    $region19: #{res_model_forward.6} parent=5 // pred_region
      // Predicated region
      $region21: #{res_model_forward.6} parent=19 // pred_check
        %p103 = pneg %p28
      $region22: #{res_model_forward.6} parent=19 // pred_check_branch
        %105 = sbr.rel (%p103) target = $region24
      $region23: #{res_model_forward.6} parent=19 // pred_region
        %s106 = smul.u32 32, %s8
        %p107 = scmp.lt.s32.totalorder %s106, 63
        %s108 = scalar_select %p107, %s106, 63
        %s109 = smul.addr %s108, 4
        %s110 = scalar_lea.vmem %s0, %s109
        %s111 = smul.u32 32, %s8
      $region24: #{res_model_forward.6} parent=19 // pred_fallthru
        _
    $region20: #{res_model_forward.6} parent=5 // pred_fallthru
      _
    %p112 = scmp.le.s32.totalorder 1, %s8
    %p113 = scmp.lt.s32.totalorder %s8, 3
    %p114 = pnand %p112, %p113
    %p115 = pneg %p114
    // Predicated region
    $region25: #{res_model_forward.6} parent=5 // pred_check
      _
    $region26: #{res_model_forward.6} parent=5 // pred_check_branch
      %117 = sbr.rel (%p114) target = $region28
    $region27: #{res_model_forward.6} parent=5 // pred_region
      %s118 = ssub.s32 %s8, 1
      %s119 = smul.u32 32, %s13
      %p120 = scmp.lt.s32.totalorder %s119, 63
      %s121 = scalar_select %p120, %s119, 63
      %s122 = smul.addr %s121, 4
      %s123 = scalar_lea.vmem %s0, %s122
      %p124 = pneg %p34
      %p125 = pneg %p31
      %p126 = pneg %p55
      %p127 = pneg %p52
      %p128 = pneg %p81
      %p129 = pneg %p78
      %p130 = scmp.lt.s32.totalorder %s13, 1
      %s131 = scalar_select %p130, %s13, 1
      %s132 = smul.addr %s131, 2
      %s133 = scalar_lea.vmem %s2, %s132
      %s134 = smul.u32 32, %s13
      %p135 = scmp.lt.s32.totalorder %s134, 63
      %s136 = scalar_select %p135, %s134, 63
      %s137 = smul.addr %s136, 4
      %s138 = scalar_lea.vmem %s0, %s137
      %s139 = smul.u32 32, %s13
      %p140 = scmp.lt.s32.totalorder %s13, 1
      %s141 = scalar_select %p140, %s13, 1
      %s142 = smul.addr %s141, 2
      %s143 = scalar_lea.vmem %s2, %s142
      %v144 = vld [vmem:[%s138] sm:$0xf]
      %v145 = vld [vmem:[%s138 + $0x4] sm:$0xf]
      %v146 = vld [vmem:[%s138 + $0x8] sm:$0xf]
      %v147 = vld [vmem:[%s138 + $0xc] sm:$0xf]
      %v148 = vld [vmem:[%s138 + $0x10] sm:$0xf]
      %v149 = vld [vmem:[%s138 + $0x14] sm:$0xf]
      %v150 = vld [vmem:[%s138 + $0x18] sm:$0xf]
      %v151 = vld [vmem:[%s138 + $0x1c] sm:$0xf]
      %v152 = vld [vmem:[%s138 + $0x20] sm:$0xf]
      %v153 = vld [vmem:[%s138 + $0x24] sm:$0xf]
      %v154 = vld [vmem:[%s138 + $0x28] sm:$0xf]
      %v155 = vld [vmem:[%s138 + $0x2c] sm:$0xf]
      %v156 = vld [vmem:[%s138 + $0x30] sm:$0xf]
      %v157 = vld [vmem:[%s138 + $0x34] sm:$0xf]
      %v158 = vld [vmem:[%s138 + $0x38] sm:$0xf]
      %v159 = vld [vmem:[%s138 + $0x3c] sm:$0xf]
      %v160 = vld [vmem:[%s138 + $0x40] sm:$0xf]
      %v161 = vld [vmem:[%s138 + $0x44] sm:$0xf]
      %v162 = vld [vmem:[%s138 + $0x48] sm:$0xf]
      %v163 = vld [vmem:[%s138 + $0x4c] sm:$0xf]
      %v164 = vld [vmem:[%s138 + $0x50] sm:$0xf]
      %v165 = vld [vmem:[%s138 + $0x54] sm:$0xf]
      %v166 = vld [vmem:[%s138 + $0x58] sm:$0xf]
      %v167 = vld [vmem:[%s138 + $0x5c] sm:$0xf]
      %v168 = vld [vmem:[%s138 + $0x60] sm:$0xf]
      %v169 = vld [vmem:[%s138 + $0x64] sm:$0xf]
      %v170 = vld [vmem:[%s138 + $0x68] sm:$0xf]
      %v171 = vld [vmem:[%s138 + $0x6c] sm:$0xf]
      %v172 = vld [vmem:[%s138 + $0x70] sm:$0xf]
      %v173 = vld [vmem:[%s138 + $0x74] sm:$0xf]
      %v174 = vld [vmem:[%s138 + $0x78] sm:$0xf]
      %v175 = vld [vmem:[%s138 + $0x7c] sm:$0xf]
      %v176 = vld [vmem:[%s1] sm:$0xf]
      %v177 = vld [vmem:[%s1 + $0x4] sm:$0xf]
      %v178 = vld [vmem:[%s1 + $0x8] sm:$0xf]
      %v179 = vld [vmem:[%s1 + $0xc] sm:$0xf]
      %v180 = vld [vmem:[%s1 + $0x10] sm:$0xf]
      %v181 = vld [vmem:[%s1 + $0x14] sm:$0xf]
      %v182 = vld [vmem:[%s1 + $0x18] sm:$0xf]
      %v183 = vld [vmem:[%s1 + $0x1c] sm:$0xf]
      %v184 = vld [vmem:[%s1 + $0x20] sm:$0xf]
      %v185 = vld [vmem:[%s1 + $0x24] sm:$0xf]
      %v186 = vld [vmem:[%s1 + $0x28] sm:$0xf]
      %v187 = vld [vmem:[%s1 + $0x2c] sm:$0xf]
      %v188 = vld [vmem:[%s1 + $0x30] sm:$0xf]
      %v189 = vld [vmem:[%s1 + $0x34] sm:$0xf]
      %v190 = vld [vmem:[%s1 + $0x38] sm:$0xf]
      %v191 = vld [vmem:[%s1 + $0x3c] sm:$0xf]
      %v224 = vunpack.c.l.b16 %v144
      %v225 = vunpack.c.l.b16 %v145
      %v226 = vunpack.c.l.b16 %v146
      %v227 = vunpack.c.l.b16 %v147
      %v228 = vunpack.c.l.b16 %v148
      %v229 = vunpack.c.l.b16 %v149
      %v230 = vunpack.c.l.b16 %v150
      %v231 = vunpack.c.l.b16 %v151
      %v232 = vunpack.c.l.b16 %v152
      %v233 = vunpack.c.l.b16 %v153
      %v234 = vunpack.c.l.b16 %v154
      %v235 = vunpack.c.l.b16 %v155
      %v236 = vunpack.c.l.b16 %v156
      %v237 = vunpack.c.l.b16 %v157
      %v238 = vunpack.c.l.b16 %v158
      %v239 = vunpack.c.l.b16 %v159
      %v240 = vunpack.c.l.b16 %v160
      %v241 = vunpack.c.l.b16 %v161
      %v242 = vunpack.c.l.b16 %v162
      %v243 = vunpack.c.l.b16 %v163
      %v244 = vunpack.c.l.b16 %v164
      %v245 = vunpack.c.l.b16 %v165
      %v246 = vunpack.c.l.b16 %v166
      %v247 = vunpack.c.l.b16 %v167
      %v248 = vunpack.c.l.b16 %v168
      %v249 = vunpack.c.l.b16 %v169
      %v250 = vunpack.c.l.b16 %v170
      %v251 = vunpack.c.l.b16 %v171
      %v252 = vunpack.c.l.b16 %v172
      %v253 = vunpack.c.l.b16 %v173
      %v254 = vunpack.c.l.b16 %v174
      %v255 = vunpack.c.l.b16 %v175
      %v256 = vpack.c.b16 %v225, %v224
      %v257 = vpack.c.b16 %v227, %v226
      %v258 = vpack.c.b16 %v229, %v228
      %v259 = vpack.c.b16 %v231, %v230
      %v260 = vpack.c.b16 %v233, %v232
      %v261 = vpack.c.b16 %v235, %v234
      %v262 = vpack.c.b16 %v237, %v236
      %v263 = vpack.c.b16 %v239, %v238
      %v264 = vpack.c.b16 %v241, %v240
      %v265 = vpack.c.b16 %v243, %v242
      %v266 = vpack.c.b16 %v245, %v244
      %v267 = vpack.c.b16 %v247, %v246
      %v268 = vpack.c.b16 %v249, %v248
      %v269 = vpack.c.b16 %v251, %v250
      %v270 = vpack.c.b16 %v253, %v252
      %v271 = vpack.c.b16 %v255, %v254
      %v304 = vunpack.c.l.b16 %v176
      %v305 = vunpack.c.l.b16 %v177
      %v306 = vunpack.c.l.b16 %v178
      %v307 = vunpack.c.l.b16 %v179
      %v308 = vunpack.c.l.b16 %v180
      %v309 = vunpack.c.l.b16 %v181
      %v310 = vunpack.c.l.b16 %v182
      %v311 = vunpack.c.l.b16 %v183
      %v312 = vunpack.c.l.b16 %v184
      %v313 = vunpack.c.l.b16 %v185
      %v314 = vunpack.c.l.b16 %v186
      %v315 = vunpack.c.l.b16 %v187
      %v316 = vunpack.c.l.b16 %v188
      %v317 = vunpack.c.l.b16 %v189
      %v318 = vunpack.c.l.b16 %v190
      %v319 = vunpack.c.l.b16 %v191
      %v320 = vpack.c.b16 %v305, %v304
      %v321 = vpack.c.b16 %v307, %v306
      %v322 = vpack.c.b16 %v309, %v308
      %v323 = vpack.c.b16 %v311, %v310
      %v324 = vpack.c.b16 %v313, %v312
      %v325 = vpack.c.b16 %v315, %v314
      %v326 = vpack.c.b16 %v317, %v316
      %v327 = vpack.c.b16 %v319, %v318
      %336 = vmatpush.bf16.msra.mxu0 %v327
      %337 = vmatpush.bf16.msra.mxu0 %v326
      %338 = vmatpush.bf16.msra.mxu0 %v325
      %339 = vmatpush.bf16.msra.mxu0 %v324
      %340 = vmatpush.bf16.msra.mxu0 %v323
      %341 = vmatpush.bf16.msra.mxu0 %v322
      %342 = vmatpush.bf16.msra.mxu0 %v321
      %343 = vmatpush.bf16.msra.mxu0 %v320
      %344 = vmatmul.bf16.gmra.mxu0 %v256
      %v345 = vpop.f32.mrf.mxu0
      %v346 = vadd.f32 0.0, %v345
      %v347 = vpop.f32.mrf.mxu0
      %v348 = vadd.f32 0.0, %v347
      %349 = vmatmul.bf16.gmra.mxu0 %v257
      %v350 = vpop.f32.mrf.mxu0
      %v351 = vadd.f32 0.0, %v350
      %v352 = vpop.f32.mrf.mxu0
      %v353 = vadd.f32 0.0, %v352
      %354 = vmatmul.bf16.gmra.mxu0 %v258
      %v355 = vpop.f32.mrf.mxu0
      %v356 = vadd.f32 0.0, %v355
      %v357 = vpop.f32.mrf.mxu0
      %v358 = vadd.f32 0.0, %v357
      %359 = vmatmul.bf16.gmra.mxu0 %v259
      %v360 = vpop.f32.mrf.mxu0
      %v361 = vadd.f32 0.0, %v360
      %v362 = vpop.f32.mrf.mxu0
      %v363 = vadd.f32 0.0, %v362
      %364 = vmatmul.bf16.gmra.mxu0 %v260
      %v365 = vpop.f32.mrf.mxu0
      %v366 = vadd.f32 0.0, %v365
      %v367 = vpop.f32.mrf.mxu0
      %v368 = vadd.f32 0.0, %v367
      %369 = vmatmul.bf16.gmra.mxu0 %v261
      %v370 = vpop.f32.mrf.mxu0
      %v371 = vadd.f32 0.0, %v370
      %v372 = vpop.f32.mrf.mxu0
      %v373 = vadd.f32 0.0, %v372
      %374 = vmatmul.bf16.gmra.mxu0 %v262
      %v375 = vpop.f32.mrf.mxu0
      %v376 = vadd.f32 0.0, %v375
      %v377 = vpop.f32.mrf.mxu0
      %v378 = vadd.f32 0.0, %v377
      %379 = vmatmul.bf16.gmra.mxu0 %v263
      %v380 = vpop.f32.mrf.mxu0
      %v381 = vadd.f32 0.0, %v380
      %v382 = vpop.f32.mrf.mxu0
      %v383 = vadd.f32 0.0, %v382
      %384 = vmatmul.bf16.gmra.mxu0 %v264
      %v385 = vpop.f32.mrf.mxu0
      %v386 = vadd.f32 0.0, %v385
      %v387 = vpop.f32.mrf.mxu0
      %v388 = vadd.f32 0.0, %v387
      %389 = vmatmul.bf16.gmra.mxu0 %v265
      %v390 = vpop.f32.mrf.mxu0
      %v391 = vadd.f32 0.0, %v390
      %v392 = vpop.f32.mrf.mxu0
      %v393 = vadd.f32 0.0, %v392
      %394 = vmatmul.bf16.gmra.mxu0 %v266
      %v395 = vpop.f32.mrf.mxu0
      %v396 = vadd.f32 0.0, %v395
      %v397 = vpop.f32.mrf.mxu0
      %v398 = vadd.f32 0.0, %v397
      %399 = vmatmul.bf16.gmra.mxu0 %v267
      %v400 = vpop.f32.mrf.mxu0
      %v401 = vadd.f32 0.0, %v400
      %v402 = vpop.f32.mrf.mxu0
      %v403 = vadd.f32 0.0, %v402
      %404 = vmatmul.bf16.gmra.mxu0 %v268
      %v405 = vpop.f32.mrf.mxu0
      %v406 = vadd.f32 0.0, %v405
      %v407 = vpop.f32.mrf.mxu0
      %v408 = vadd.f32 0.0, %v407
      %409 = vmatmul.bf16.gmra.mxu0 %v269
      %v410 = vpop.f32.mrf.mxu0
      %v411 = vadd.f32 0.0, %v410
      %v412 = vpop.f32.mrf.mxu0
      %v413 = vadd.f32 0.0, %v412
      %414 = vmatmul.bf16.gmra.mxu0 %v270
      %v415 = vpop.f32.mrf.mxu0
      %v416 = vadd.f32 0.0, %v415
      %v417 = vpop.f32.mrf.mxu0
      %v418 = vadd.f32 0.0, %v417
      %419 = vmatmul.bf16.gmra.mxu0 %v271
      %v420 = vpop.f32.mrf.mxu0
      %v421 = vadd.f32 0.0, %v420
      %v422 = vpop.f32.mrf.mxu0
      %v423 = vadd.f32 0.0, %v422
      %424 = vdwg.mxu0
      %v425 = vadd.f32 %v346, %v348
      %v426 = vadd.f32 %v425, %v351
      %v427 = vadd.f32 %v426, %v353
      %v428 = vadd.f32 %v427, %v356
      %v429 = vadd.f32 %v428, %v358
      %v430 = vadd.f32 %v429, %v361
      %v431 = vadd.f32 %v430, %v363
      %v432 = vadd.f32 %v431, %v366
      %v433 = vadd.f32 %v432, %v368
      %v434 = vadd.f32 %v433, %v371
      %v435 = vadd.f32 %v434, %v373
      %v436 = vadd.f32 %v435, %v376
      %v437 = vadd.f32 %v436, %v378
      %v438 = vadd.f32 %v437, %v381
      %v439 = vadd.f32 %v438, %v383
      %v440 = vadd.f32 %v439, %v386
      %v441 = vadd.f32 %v440, %v388
      %v442 = vadd.f32 %v441, %v391
      %v443 = vadd.f32 %v442, %v393
      %v444 = vadd.f32 %v443, %v396
      %v445 = vadd.f32 %v444, %v398
      %v446 = vadd.f32 %v445, %v401
      %v447 = vadd.f32 %v446, %v403
      %v448 = vadd.f32 %v447, %v406
      %v449 = vadd.f32 %v448, %v408
      %v450 = vadd.f32 %v449, %v411
      %v451 = vadd.f32 %v450, %v413
      %v452 = vadd.f32 %v451, %v416
      %v453 = vadd.f32 %v452, %v418
      %v454 = vadd.f32 %v453, %v421
      %v455 = vadd.f32 %v454, %v423
      %v456 = vrot.slane %v455, 4
      %v457 = vadd.f32 %v455, %v456
      %v458 = vrot.slane %v457, 2
      %v459 = vadd.f32 %v457, %v458
      %v460 = vrot.slane %v459, 1
      %v461 = vadd.f32 %v459, %v460
      %v462 = vmul.f32 %v346, %v346
      %v463 = vmul.f32 %v348, %v348
      %v464 = vmul.f32 %v351, %v351
      %v465 = vmul.f32 %v353, %v353
      %v466 = vmul.f32 %v356, %v356
      %v467 = vmul.f32 %v358, %v358
      %v468 = vmul.f32 %v361, %v361
      %v469 = vmul.f32 %v363, %v363
      %v470 = vmul.f32 %v366, %v366
      %v471 = vmul.f32 %v368, %v368
      %v472 = vmul.f32 %v371, %v371
      %v473 = vmul.f32 %v373, %v373
      %v474 = vmul.f32 %v376, %v376
      %v475 = vmul.f32 %v378, %v378
      %v476 = vmul.f32 %v381, %v381
      %v477 = vmul.f32 %v383, %v383
      %v478 = vmul.f32 %v386, %v386
      %v479 = vmul.f32 %v388, %v388
      %v480 = vmul.f32 %v391, %v391
      %v481 = vmul.f32 %v393, %v393
      %v482 = vmul.f32 %v396, %v396
      %v483 = vmul.f32 %v398, %v398
      %v484 = vmul.f32 %v401, %v401
      %v485 = vmul.f32 %v403, %v403
      %v486 = vmul.f32 %v406, %v406
      %v487 = vmul.f32 %v408, %v408
      %v488 = vmul.f32 %v411, %v411
      %v489 = vmul.f32 %v413, %v413
      %v490 = vmul.f32 %v416, %v416
      %v491 = vmul.f32 %v418, %v418
      %v492 = vmul.f32 %v421, %v421
      %v493 = vmul.f32 %v423, %v423
      %v494 = vadd.f32 %v462, %v463
      %v495 = vadd.f32 %v494, %v464
      %v496 = vadd.f32 %v495, %v465
      %v497 = vadd.f32 %v496, %v466
      %v498 = vadd.f32 %v497, %v467
      %v499 = vadd.f32 %v498, %v468
      %v500 = vadd.f32 %v499, %v469
      %v501 = vadd.f32 %v500, %v470
      %v502 = vadd.f32 %v501, %v471
      %v503 = vadd.f32 %v502, %v472
      %v504 = vadd.f32 %v503, %v473
      %v505 = vadd.f32 %v504, %v474
      %v506 = vadd.f32 %v505, %v475
      %v507 = vadd.f32 %v506, %v476
      %v508 = vadd.f32 %v507, %v477
      %v509 = vadd.f32 %v508, %v478
      %v510 = vadd.f32 %v509, %v479
      %v511 = vadd.f32 %v510, %v480
      %v512 = vadd.f32 %v511, %v481
      %v513 = vadd.f32 %v512, %v482
      %v514 = vadd.f32 %v513, %v483
      %v515 = vadd.f32 %v514, %v484
      %v516 = vadd.f32 %v515, %v485
      %v517 = vadd.f32 %v516, %v486
      %v518 = vadd.f32 %v517, %v487
      %v519 = vadd.f32 %v518, %v488
      %v520 = vadd.f32 %v519, %v489
      %v521 = vadd.f32 %v520, %v490
      %v522 = vadd.f32 %v521, %v491
      %v523 = vadd.f32 %v522, %v492
      %v524 = vadd.f32 %v523, %v493
      %v525 = vrot.slane %v524, 4
      %v526 = vadd.f32 %v524, %v525
      %v527 = vrot.slane %v526, 2
      %v528 = vadd.f32 %v526, %v527
      %v529 = vrot.slane %v528, 1
      %v530 = vadd.f32 %v528, %v529
      %vm531 = vcmask 1040384
      %v532 = vsel %vm531, %v461, %v530
      %533 = vst [vmem:[%s143] sm:$0x3] %v532
      %p534 = scmp.lt.s32.totalorder %s13, 1
      %s535 = scalar_select %p534, %s13, 1
      %s536 = smul.addr %s535, 2
      %s537 = scalar_lea.vmem %s2, %s536
      // Predicated region
      $region29: #{res_model_forward.6} parent=27 // pred_check
        %p538 = pneg %p78
      $region30: #{res_model_forward.6} parent=27 // pred_check_branch
        %540 = sbr.rel (%p538) target = $region32
      $region31: #{res_model_forward.6} parent=27 // pred_region
        _
      $region32: #{res_model_forward.6} parent=27 // pred_fallthru
        _
    $region28: #{res_model_forward.6} parent=5 // pred_fallthru
      _
    %p541 = scmp.le.s32.totalorder 2, %s8
    // Predicated region
    $region33: #{res_model_forward.6} parent=5 // pred_check
      %p542 = pneg %p541
    $region34: #{res_model_forward.6} parent=5 // pred_check_branch
      %544 = sbr.rel (%p542) target = $region36
    $region35: #{res_model_forward.6} parent=5 // pred_region
      %s545 = ssub.s32 %s8, 2
      // Predicated region
      $region37: #{res_model_forward.6} parent=35 // pred_check
        %p546 = pneg %p84
      $region38: #{res_model_forward.6} parent=35 // pred_check_branch
        %548 = sbr.rel (%p546) target = $region40
      $region39: #{res_model_forward.6} parent=35 // pred_region
        %p549 = scmp.lt.s32.totalorder %s14, 1
        %s550 = scalar_select %p549, %s14, 1
        %s551 = smul.addr %s550, 2
        %s552 = scalar_lea.vmem %s2, %s551
      $region40: #{res_model_forward.6} parent=35 // pred_fallthru
        _
    $region36: #{res_model_forward.6} parent=5 // pred_fallthru
      _
  $region6: #{res_model_forward.6} parent=0 // loop_footer
    %s12 = sadd.s32 1, %s8
  $region7: #{res_model_forward.6} parent=0 // loop_footer_branch
    %7 = sbr.rel target = $region3
  $region8: #{res_model_forward.6} parent=0 // loop_exit
    _

// kernel: res_model_forward.7
$region0: #{res_model_forward.7}
  #allocation0 [shape = 'u32[]', space=smem, size = 0x4, offset = 0x4, fixed_abs, tag = 'smem constant byte address 0x4 - core index']
  #allocation1 [shape = 'u32[72,128]{1,0:T(1,128)}', space=vmem, size = 0x9000, scoped, tag = 'internal scratch']
  %s0 = inlined_call_operand.vmem [shape: bf16[512,128], index: 0, kind: input, shape index: {}]
  %s1 = inlined_call_operand.vmem [shape: bf16[128,128], index: 1, kind: input, shape index: {}]
  %s2 = inlined_call_operand.vmem [shape: f32[1,128], index: 2, kind: input, shape index: {}]
  %s3 = inlined_call_operand.vmem [shape: f32[1,128], index: 3, kind: input, shape index: {}]
  %s4 = inlined_call_operand.vmem [shape: bf16[512,8], index: 4, kind: output, shape index: {}]
  %s5 = sld [smem:[#allocation0]]
  $region49: #{res_model_forward.7} parent=0
    _
  %s7 = ssub.s32 1, %s5
  %s8 = scalar_select 0, %s7, %s5
  loop: start=0, step=1, limit=4
  $region2: #{res_model_forward.7} parent=0 // loop_pre_header
    _
  $region3: #{res_model_forward.7} parent=0 // loop_header
    %s10 = sphi 0, %s14
    %p11 = scmp.ge.s32.totalorder %s10, 4
    %s20 = sphi 0, %s22
    %s23 = sphi 0, %s20
    %s24 = sphi 0, %s23
    %s40 = sphi 0, %s24
    %s44 = sphi 0, %s44
    %s46 = sphi 0, %s44
    %s47 = sphi 0, %s46
    %s61 = sphi 0, %s47
    %s65 = sphi 0, %s65
    %s67 = sphi 0, %s65
    %s68 = sphi 0, %s67
    %s82 = sphi 0, %s68
    %s86 = sphi 0, %s86
    %s88 = sphi 0, %s86
    %s89 = sphi 0, %s88
    %s103 = sphi 0, %s89
    %s109 = sphi 0, %s111
    %s112 = sphi 0, %s109
    %s113 = sphi 0, %s112
    %s129 = sphi 0, %s113
  $region4: #{res_model_forward.7} parent=0 // loop_header_branch
    %13 = sbr.rel (%p11) target = $region8
  $region5: #{res_model_forward.7} parent=0 // loop_body
    %s15 = ssub.s32 %s10, 1
    %s16 = ssub.s32 %s10, 2
    %s17 = sadd.s32 %s10, 1
    %s18 = ssub.s32 %s10, %s17
    %p19 = scmp.eq.s32.totalorder %s18, 0
    %s21 = sadd.s32 %s20, 1
    %s22 = scalar_select %p19, %s20, %s21
    %p25 = pneg %p19
    %p26 = scmp.eq.s32.totalorder %s10, 1
    %p27 = por %p25, %p26
    %p28 = scmp.ne.s32.totalorder %s20, %s23
    %p29 = scmp.eq.s32.totalorder %s10, 0
    %p30 = por %p28, %p29
    %p31 = scmp.ne.s32.totalorder %s20, %s23
    %p32 = scmp.eq.s32.totalorder %s15, 1
    %p33 = por %p31, %p32
    %p34 = scmp.ne.s32.totalorder %s23, %s24
    %p35 = scmp.eq.s32.totalorder %s15, 0
    %p36 = por %p34, %p35
    %p37 = scmp.ne.s32.totalorder %s23, %s24
    %p38 = scmp.eq.s32.totalorder %s16, 1
    %p39 = por %p37, %p38
    %p41 = scmp.ne.s32.totalorder %s24, %s40
    %p42 = scmp.eq.s32.totalorder %s16, 0
    %p43 = por %p41, %p42
    %s45 = sadd.s32 %s44, 1
    %p48 = scmp.eq.s32.totalorder %s10, 1
    %p49 = scmp.ne.s32.totalorder %s44, %s46
    %p50 = scmp.eq.s32.totalorder %s10, 0
    %p51 = por %p49, %p50
    %p52 = scmp.ne.s32.totalorder %s44, %s46
    %p53 = scmp.eq.s32.totalorder %s15, 1
    %p54 = por %p52, %p53
    %p55 = scmp.ne.s32.totalorder %s46, %s47
    %p56 = scmp.eq.s32.totalorder %s15, 0
    %p57 = por %p55, %p56
    %p58 = scmp.ne.s32.totalorder %s46, %s47
    %p59 = scmp.eq.s32.totalorder %s16, 1
    %p60 = por %p58, %p59
    %p62 = scmp.ne.s32.totalorder %s47, %s61
    %p63 = scmp.eq.s32.totalorder %s16, 0
    %p64 = por %p62, %p63
    %s66 = sadd.s32 %s65, 1
    %p69 = scmp.eq.s32.totalorder %s10, 1
    %p70 = scmp.ne.s32.totalorder %s65, %s67
    %p71 = scmp.eq.s32.totalorder %s10, 0
    %p72 = por %p70, %p71
    %p73 = scmp.ne.s32.totalorder %s65, %s67
    %p74 = scmp.eq.s32.totalorder %s15, 1
    %p75 = por %p73, %p74
    %p76 = scmp.ne.s32.totalorder %s67, %s68
    %p77 = scmp.eq.s32.totalorder %s15, 0
    %p78 = por %p76, %p77
    %p79 = scmp.ne.s32.totalorder %s67, %s68
    %p80 = scmp.eq.s32.totalorder %s16, 1
    %p81 = por %p79, %p80
    %p83 = scmp.ne.s32.totalorder %s68, %s82
    %p84 = scmp.eq.s32.totalorder %s16, 0
    %p85 = por %p83, %p84
    %s87 = sadd.s32 %s86, 1
    %p90 = scmp.eq.s32.totalorder %s10, 1
    %p91 = scmp.ne.s32.totalorder %s86, %s88
    %p92 = scmp.eq.s32.totalorder %s10, 0
    %p93 = por %p91, %p92
    %p94 = scmp.ne.s32.totalorder %s86, %s88
    %p95 = scmp.eq.s32.totalorder %s15, 1
    %p96 = por %p94, %p95
    %p97 = scmp.ne.s32.totalorder %s88, %s89
    %p98 = scmp.eq.s32.totalorder %s15, 0
    %p99 = por %p97, %p98
    %p100 = scmp.ne.s32.totalorder %s88, %s89
    %p101 = scmp.eq.s32.totalorder %s16, 1
    %p102 = por %p100, %p101
    %p104 = scmp.ne.s32.totalorder %s89, %s103
    %p105 = scmp.eq.s32.totalorder %s16, 0
    %p106 = por %p104, %p105
    %s107 = ssub.s32 %s10, %s17
    %p108 = scmp.eq.s32.totalorder %s107, 0
    %s110 = sadd.s32 %s109, 1
    %s111 = scalar_select %p108, %s109, %s110
    %p114 = pneg %p108
    %p115 = scmp.eq.s32.totalorder %s10, 1
    %p116 = por %p114, %p115
    %p117 = scmp.ne.s32.totalorder %s109, %s112
    %p118 = scmp.eq.s32.totalorder %s10, 0
    %p119 = por %p117, %p118
    %p120 = scmp.ne.s32.totalorder %s109, %s112
    %p121 = scmp.eq.s32.totalorder %s15, 1
    %p122 = por %p120, %p121
    %p123 = scmp.ne.s32.totalorder %s112, %s113
    %p124 = scmp.eq.s32.totalorder %s15, 0
    %p125 = por %p123, %p124
    %p126 = scmp.ne.s32.totalorder %s112, %s113
    %p127 = scmp.eq.s32.totalorder %s16, 1
    %p128 = por %p126, %p127
    %p130 = scmp.ne.s32.totalorder %s113, %s129
    %p131 = scmp.eq.s32.totalorder %s16, 0
    %p132 = por %p130, %p131
    %p133 = scmp.le.s32.totalorder 1, %s10
    %p134 = scmp.lt.s32.totalorder %s10, 3
    %p135 = pnand %p133, %p134
    %p136 = pneg %p135
    // Predicated region
    $region9: #{res_model_forward.7} parent=5 // pred_check
      _
    $region10: #{res_model_forward.7} parent=5 // pred_check_branch
      %138 = sbr.rel (%p135) target = $region12
    $region11: #{res_model_forward.7} parent=5 // pred_region
      %s139 = ssub.s32 %s10, 1
      // Predicated region
      $region13: #{res_model_forward.7} parent=11 // pred_check
        %p140 = pneg %p57
      $region14: #{res_model_forward.7} parent=11 // pred_check_branch
        %142 = sbr.rel (%p140) target = $region16
      $region15: #{res_model_forward.7} parent=11 // pred_region
        _
      $region16: #{res_model_forward.7} parent=11 // pred_fallthru
        _
      // Predicated region
      $region17: #{res_model_forward.7} parent=11 // pred_check
        %p143 = pneg %p78
      $region18: #{res_model_forward.7} parent=11 // pred_check_branch
        %145 = sbr.rel (%p143) target = $region20
      $region19: #{res_model_forward.7} parent=11 // pred_region
        _
      $region20: #{res_model_forward.7} parent=11 // pred_fallthru
        _
      // Predicated region
      $region21: #{res_model_forward.7} parent=11 // pred_check
        %p146 = pneg %p99
      $region22: #{res_model_forward.7} parent=11 // pred_check_branch
        %148 = sbr.rel (%p146) target = $region24
      $region23: #{res_model_forward.7} parent=11 // pred_region
        _
      $region24: #{res_model_forward.7} parent=11 // pred_fallthru
        _
    $region12: #{res_model_forward.7} parent=5 // pred_fallthru
      _
    %p149 = scmp.lt.s32.totalorder %s10, 2
    // Predicated region
    $region25: #{res_model_forward.7} parent=5 // pred_check
      %p150 = pneg %p149
    $region26: #{res_model_forward.7} parent=5 // pred_check_branch
      %152 = sbr.rel (%p150) target = $region28
    $region27: #{res_model_forward.7} parent=5 // pred_region
      // Predicated region
      $region29: #{res_model_forward.7} parent=27 // pred_check
        %p153 = pneg %p30
      $region30: #{res_model_forward.7} parent=27 // pred_check_branch
        %155 = sbr.rel (%p153) target = $region32
      $region31: #{res_model_forward.7} parent=27 // pred_region
        %s156 = smul.u32 32, %s10
        %p157 = scmp.lt.s32.totalorder %s156, 63
        %s158 = scalar_select %p157, %s156, 63
        %s159 = smul.addr %s158, 4
        %s160 = scalar_lea.vmem %s0, %s159
        %s161 = smul.u32 32, %s10
      $region32: #{res_model_forward.7} parent=27 // pred_fallthru
        _
    $region28: #{res_model_forward.7} parent=5 // pred_fallthru
      _
    %p162 = scmp.le.s32.totalorder 1, %s10
    %p163 = scmp.lt.s32.totalorder %s10, 3
    %p164 = pnand %p162, %p163
    %p165 = pneg %p164
    // Predicated region
    $region33: #{res_model_forward.7} parent=5 // pred_check
      _
    $region34: #{res_model_forward.7} parent=5 // pred_check_branch
      %167 = sbr.rel (%p164) target = $region36
    $region35: #{res_model_forward.7} parent=5 // pred_region
      %s168 = ssub.s32 %s10, 1
      %s169 = smul.u32 32, %s15
      %p170 = scmp.lt.s32.totalorder %s169, 63
      %s171 = scalar_select %p170, %s169, 63
      %s172 = smul.addr %s171, 4
      %s173 = scalar_lea.vmem %s0, %s172
      %p174 = pneg %p36
      %p175 = pneg %p33
      %p176 = pneg %p57
      %p177 = pneg %p54
      %p178 = pneg %p78
      %p179 = pneg %p75
      %p180 = pneg %p99
      %p181 = pneg %p96
      %p182 = pneg %p125
      %p183 = pneg %p122
      %s184 = smul.u32 32, %s15
      %p185 = scmp.lt.s32.totalorder %s184, 63
      %s186 = scalar_select %p185, %s184, 63
      %s187 = smul.addr %s186, 4
      %s188 = scalar_lea.vmem %s4, %s187
      %s189 = smul.u32 32, %s15
      %p190 = scmp.lt.s32.totalorder %s189, 63
      %s191 = scalar_select %p190, %s189, 63
      %s192 = smul.addr %s191, 4
      %s193 = scalar_lea.vmem %s0, %s192
      %s194 = smul.u32 32, %s15
      %s195 = smul.u32 32, %s15
      %p196 = scmp.lt.s32.totalorder %s195, 63
      %s197 = scalar_select %p196, %s195, 63
      %s198 = smul.addr %s197, 4
      %s199 = scalar_lea.vmem %s4, %s198
      %s200 = smul.u32 32, %s15
      %v201 = vld [vmem:[%s193] sm:$0xf]
      %v202 = vld [vmem:[%s193 + $0x4] sm:$0xf]
      %v203 = vld [vmem:[%s193 + $0x8] sm:$0xf]
      %v204 = vld [vmem:[%s193 + $0xc] sm:$0xf]
      %v205 = vld [vmem:[%s193 + $0x10] sm:$0xf]
      %v206 = vld [vmem:[%s193 + $0x14] sm:$0xf]
      %v207 = vld [vmem:[%s193 + $0x18] sm:$0xf]
      %v208 = vld [vmem:[%s193 + $0x1c] sm:$0xf]
      %v209 = vld [vmem:[%s193 + $0x20] sm:$0xf]
      %v210 = vld [vmem:[%s193 + $0x24] sm:$0xf]
      %v211 = vld [vmem:[%s193 + $0x28] sm:$0xf]
      %v212 = vld [vmem:[%s193 + $0x2c] sm:$0xf]
      %v213 = vld [vmem:[%s193 + $0x30] sm:$0xf]
      %v214 = vld [vmem:[%s193 + $0x34] sm:$0xf]
      %v215 = vld [vmem:[%s193 + $0x38] sm:$0xf]
      %v216 = vld [vmem:[%s193 + $0x3c] sm:$0xf]
      %v217 = vld [vmem:[%s193 + $0x40] sm:$0xf]
      %v218 = vld [vmem:[%s193 + $0x44] sm:$0xf]
      %v219 = vld [vmem:[%s193 + $0x48] sm:$0xf]
      %v220 = vld [vmem:[%s193 + $0x4c] sm:$0xf]
      %v221 = vld [vmem:[%s193 + $0x50] sm:$0xf]
      %v222 = vld [vmem:[%s193 + $0x54] sm:$0xf]
      %v223 = vld [vmem:[%s193 + $0x58] sm:$0xf]
      %v224 = vld [vmem:[%s193 + $0x5c] sm:$0xf]
      %v225 = vld [vmem:[%s193 + $0x60] sm:$0xf]
      %v226 = vld [vmem:[%s193 + $0x64] sm:$0xf]
      %v227 = vld [vmem:[%s193 + $0x68] sm:$0xf]
      %v228 = vld [vmem:[%s193 + $0x6c] sm:$0xf]
      %v229 = vld [vmem:[%s193 + $0x70] sm:$0xf]
      %v230 = vld [vmem:[%s193 + $0x74] sm:$0xf]
      %v231 = vld [vmem:[%s193 + $0x78] sm:$0xf]
      %v232 = vld [vmem:[%s193 + $0x7c] sm:$0xf]
      %v233 = vld [vmem:[%s1] sm:$0xf]
      %v234 = vld [vmem:[%s1 + $0x4] sm:$0xf]
      %v235 = vld [vmem:[%s1 + $0x8] sm:$0xf]
      %v236 = vld [vmem:[%s1 + $0xc] sm:$0xf]
      %v237 = vld [vmem:[%s1 + $0x10] sm:$0xf]
      %v238 = vld [vmem:[%s1 + $0x14] sm:$0xf]
      %v239 = vld [vmem:[%s1 + $0x18] sm:$0xf]
      %v240 = vld [vmem:[%s1 + $0x1c] sm:$0xf]
      %v241 = vld [vmem:[%s1 + $0x20] sm:$0xf]
      %v242 = vld [vmem:[%s1 + $0x24] sm:$0xf]
      %v243 = vld [vmem:[%s1 + $0x28] sm:$0xf]
      %v244 = vld [vmem:[%s1 + $0x2c] sm:$0xf]
      %v245 = vld [vmem:[%s1 + $0x30] sm:$0xf]
      %v246 = vld [vmem:[%s1 + $0x34] sm:$0xf]
      %v247 = vld [vmem:[%s1 + $0x38] sm:$0xf]
      %v248 = vld [vmem:[%s1 + $0x3c] sm:$0xf]
      %v281 = vunpack.c.l.b16 %v201
      %v282 = vunpack.c.l.b16 %v202
      %v283 = vunpack.c.l.b16 %v203
      %v284 = vunpack.c.l.b16 %v204
      %v285 = vunpack.c.l.b16 %v205
      %v286 = vunpack.c.l.b16 %v206
      %v287 = vunpack.c.l.b16 %v207
      %v288 = vunpack.c.l.b16 %v208
      %v289 = vunpack.c.l.b16 %v209
      %v290 = vunpack.c.l.b16 %v210
      %v291 = vunpack.c.l.b16 %v211
      %v292 = vunpack.c.l.b16 %v212
      %v293 = vunpack.c.l.b16 %v213
      %v294 = vunpack.c.l.b16 %v214
      %v295 = vunpack.c.l.b16 %v215
      %v296 = vunpack.c.l.b16 %v216
      %v297 = vunpack.c.l.b16 %v217
      %v298 = vunpack.c.l.b16 %v218
      %v299 = vunpack.c.l.b16 %v219
      %v300 = vunpack.c.l.b16 %v220
      %v301 = vunpack.c.l.b16 %v221
      %v302 = vunpack.c.l.b16 %v222
      %v303 = vunpack.c.l.b16 %v223
      %v304 = vunpack.c.l.b16 %v224
      %v305 = vunpack.c.l.b16 %v225
      %v306 = vunpack.c.l.b16 %v226
      %v307 = vunpack.c.l.b16 %v227
      %v308 = vunpack.c.l.b16 %v228
      %v309 = vunpack.c.l.b16 %v229
      %v310 = vunpack.c.l.b16 %v230
      %v311 = vunpack.c.l.b16 %v231
      %v312 = vunpack.c.l.b16 %v232
      %v313 = vpack.c.b16 %v282, %v281
      %v314 = vpack.c.b16 %v284, %v283
      %v315 = vpack.c.b16 %v286, %v285
      %v316 = vpack.c.b16 %v288, %v287
      %v317 = vpack.c.b16 %v290, %v289
      %v318 = vpack.c.b16 %v292, %v291
      %v319 = vpack.c.b16 %v294, %v293
      %v320 = vpack.c.b16 %v296, %v295
      %v321 = vpack.c.b16 %v298, %v297
      %v322 = vpack.c.b16 %v300, %v299
      %v323 = vpack.c.b16 %v302, %v301
      %v324 = vpack.c.b16 %v304, %v303
      %v325 = vpack.c.b16 %v306, %v305
      %v326 = vpack.c.b16 %v308, %v307
      %v327 = vpack.c.b16 %v310, %v309
      %v328 = vpack.c.b16 %v312, %v311
      %v361 = vunpack.c.l.b16 %v233
      %v362 = vunpack.c.l.b16 %v234
      %v363 = vunpack.c.l.b16 %v235
      %v364 = vunpack.c.l.b16 %v236
      %v365 = vunpack.c.l.b16 %v237
      %v366 = vunpack.c.l.b16 %v238
      %v367 = vunpack.c.l.b16 %v239
      %v368 = vunpack.c.l.b16 %v240
      %v369 = vunpack.c.l.b16 %v241
      %v370 = vunpack.c.l.b16 %v242
      %v371 = vunpack.c.l.b16 %v243
      %v372 = vunpack.c.l.b16 %v244
      %v373 = vunpack.c.l.b16 %v245
      %v374 = vunpack.c.l.b16 %v246
      %v375 = vunpack.c.l.b16 %v247
      %v376 = vunpack.c.l.b16 %v248
      %v377 = vpack.c.b16 %v362, %v361
      %v378 = vpack.c.b16 %v364, %v363
      %v379 = vpack.c.b16 %v366, %v365
      %v380 = vpack.c.b16 %v368, %v367
      %v381 = vpack.c.b16 %v370, %v369
      %v382 = vpack.c.b16 %v372, %v371
      %v383 = vpack.c.b16 %v374, %v373
      %v384 = vpack.c.b16 %v376, %v375
      %393 = vmatpush.bf16.msra.mxu0 %v384
      %394 = vmatpush.bf16.msra.mxu0 %v383
      %395 = vmatpush.bf16.msra.mxu0 %v382
      %396 = vmatpush.bf16.msra.mxu0 %v381
      %397 = vmatpush.bf16.msra.mxu0 %v380
      %398 = vmatpush.bf16.msra.mxu0 %v379
      %399 = vmatpush.bf16.msra.mxu0 %v378
      %400 = vmatpush.bf16.msra.mxu0 %v377
      %401 = vmatmul.bf16.gmra.mxu0 %v313
      %v402 = vpop.f32.mrf.mxu0
      %v403 = vadd.f32 0.0, %v402
      %v404 = vpop.f32.mrf.mxu0
      %v405 = vadd.f32 0.0, %v404
      %406 = vmatmul.bf16.gmra.mxu0 %v314
      %v407 = vpop.f32.mrf.mxu0
      %v408 = vadd.f32 0.0, %v407
      %v409 = vpop.f32.mrf.mxu0
      %v410 = vadd.f32 0.0, %v409
      %411 = vmatmul.bf16.gmra.mxu0 %v315
      %v412 = vpop.f32.mrf.mxu0
      %v413 = vadd.f32 0.0, %v412
      %v414 = vpop.f32.mrf.mxu0
      %v415 = vadd.f32 0.0, %v414
      %416 = vmatmul.bf16.gmra.mxu0 %v316
      %v417 = vpop.f32.mrf.mxu0
      %v418 = vadd.f32 0.0, %v417
      %v419 = vpop.f32.mrf.mxu0
      %v420 = vadd.f32 0.0, %v419
      %421 = vmatmul.bf16.gmra.mxu0 %v317
      %v422 = vpop.f32.mrf.mxu0
      %v423 = vadd.f32 0.0, %v422
      %v424 = vpop.f32.mrf.mxu0
      %v425 = vadd.f32 0.0, %v424
      %426 = vmatmul.bf16.gmra.mxu0 %v318
      %v427 = vpop.f32.mrf.mxu0
      %v428 = vadd.f32 0.0, %v427
      %v429 = vpop.f32.mrf.mxu0
      %v430 = vadd.f32 0.0, %v429
      %431 = vmatmul.bf16.gmra.mxu0 %v319
      %v432 = vpop.f32.mrf.mxu0
      %v433 = vadd.f32 0.0, %v432
      %v434 = vpop.f32.mrf.mxu0
      %v435 = vadd.f32 0.0, %v434
      %436 = vmatmul.bf16.gmra.mxu0 %v320
      %v437 = vpop.f32.mrf.mxu0
      %v438 = vadd.f32 0.0, %v437
      %v439 = vpop.f32.mrf.mxu0
      %v440 = vadd.f32 0.0, %v439
      %441 = vmatmul.bf16.gmra.mxu0 %v321
      %v442 = vpop.f32.mrf.mxu0
      %v443 = vadd.f32 0.0, %v442
      %v444 = vpop.f32.mrf.mxu0
      %v445 = vadd.f32 0.0, %v444
      %446 = vmatmul.bf16.gmra.mxu0 %v322
      %v447 = vpop.f32.mrf.mxu0
      %v448 = vadd.f32 0.0, %v447
      %v449 = vpop.f32.mrf.mxu0
      %v450 = vadd.f32 0.0, %v449
      %451 = vmatmul.bf16.gmra.mxu0 %v323
      %v452 = vpop.f32.mrf.mxu0
      %v453 = vadd.f32 0.0, %v452
      %v454 = vpop.f32.mrf.mxu0
      %v455 = vadd.f32 0.0, %v454
      %456 = vmatmul.bf16.gmra.mxu0 %v324
      %v457 = vpop.f32.mrf.mxu0
      %v458 = vadd.f32 0.0, %v457
      %v459 = vpop.f32.mrf.mxu0
      %v460 = vadd.f32 0.0, %v459
      %461 = vmatmul.bf16.gmra.mxu0 %v325
      %v462 = vpop.f32.mrf.mxu0
      %v463 = vadd.f32 0.0, %v462
      %v464 = vpop.f32.mrf.mxu0
      %v465 = vadd.f32 0.0, %v464
      %466 = vmatmul.bf16.gmra.mxu0 %v326
      %v467 = vpop.f32.mrf.mxu0
      %v468 = vadd.f32 0.0, %v467
      %v469 = vpop.f32.mrf.mxu0
      %v470 = vadd.f32 0.0, %v469
      %471 = vmatmul.bf16.gmra.mxu0 %v327
      %v472 = vpop.f32.mrf.mxu0
      %v473 = vadd.f32 0.0, %v472
      %v474 = vpop.f32.mrf.mxu0
      %v475 = vadd.f32 0.0, %v474
      %476 = vmatmul.bf16.gmra.mxu0 %v328
      %v477 = vpop.f32.mrf.mxu0
      %v478 = vadd.f32 0.0, %v477
      %v479 = vpop.f32.mrf.mxu0
      %v480 = vadd.f32 0.0, %v479
      %481 = vdwg.mxu0
      %v482 = vld [vmem:[%s2] sm:$0x1]
      %v484 = vperm.slane %v482, 0
      %v486 = vmul.f32 %v403, %v484
      %v487 = vmul.f32 %v405, %v484
      %v488 = vmul.f32 %v408, %v484
      %v489 = vmul.f32 %v410, %v484
      %v490 = vmul.f32 %v413, %v484
      %v491 = vmul.f32 %v415, %v484
      %v492 = vmul.f32 %v418, %v484
      %v493 = vmul.f32 %v420, %v484
      %v494 = vmul.f32 %v423, %v484
      %v495 = vmul.f32 %v425, %v484
      %v496 = vmul.f32 %v428, %v484
      %v497 = vmul.f32 %v430, %v484
      %v498 = vmul.f32 %v433, %v484
      %v499 = vmul.f32 %v435, %v484
      %v500 = vmul.f32 %v438, %v484
      %v501 = vmul.f32 %v440, %v484
      %v502 = vmul.f32 %v443, %v484
      %v503 = vmul.f32 %v445, %v484
      %v504 = vmul.f32 %v448, %v484
      %v505 = vmul.f32 %v450, %v484
      %v506 = vmul.f32 %v453, %v484
      %v507 = vmul.f32 %v455, %v484
      %v508 = vmul.f32 %v458, %v484
      %v509 = vmul.f32 %v460, %v484
      %v510 = vmul.f32 %v463, %v484
      %v511 = vmul.f32 %v465, %v484
      %v512 = vmul.f32 %v468, %v484
      %v513 = vmul.f32 %v470, %v484
      %v514 = vmul.f32 %v473, %v484
      %v515 = vmul.f32 %v475, %v484
      %v516 = vmul.f32 %v478, %v484
      %v517 = vmul.f32 %v480, %v484
      %v518 = vld [vmem:[%s3] sm:$0x1]
      %v520 = vperm.slane %v518, 0
      %v522 = vadd.f32 %v486, %v520
      %v523 = vadd.f32 %v487, %v520
      %v524 = vadd.f32 %v488, %v520
      %v525 = vadd.f32 %v489, %v520
      %v526 = vadd.f32 %v490, %v520
      %v527 = vadd.f32 %v491, %v520
      %v528 = vadd.f32 %v492, %v520
      %v529 = vadd.f32 %v493, %v520
      %v530 = vadd.f32 %v494, %v520
      %v531 = vadd.f32 %v495, %v520
      %v532 = vadd.f32 %v496, %v520
      %v533 = vadd.f32 %v497, %v520
      %v534 = vadd.f32 %v498, %v520
      %v535 = vadd.f32 %v499, %v520
      %v536 = vadd.f32 %v500, %v520
      %v537 = vadd.f32 %v501, %v520
      %v538 = vadd.f32 %v502, %v520
      %v539 = vadd.f32 %v503, %v520
      %v540 = vadd.f32 %v504, %v520
      %v541 = vadd.f32 %v505, %v520
      %v542 = vadd.f32 %v506, %v520
      %v543 = vadd.f32 %v507, %v520
      %v544 = vadd.f32 %v508, %v520
      %v545 = vadd.f32 %v509, %v520
      %v546 = vadd.f32 %v510, %v520
      %v547 = vadd.f32 %v511, %v520
      %v548 = vadd.f32 %v512, %v520
      %v549 = vadd.f32 %v513, %v520
      %v550 = vadd.f32 %v514, %v520
      %v551 = vadd.f32 %v515, %v520
      %v552 = vadd.f32 %v516, %v520
      %v553 = vadd.f32 %v517, %v520
      %v554 = vmax.f32 %v522, 0.0
      %v555 = vmax.f32 %v523, 0.0
      %v556 = vmax.f32 %v524, 0.0
      %v557 = vmax.f32 %v525, 0.0
      %v558 = vmax.f32 %v526, 0.0
      %v559 = vmax.f32 %v527, 0.0
      %v560 = vmax.f32 %v528, 0.0
      %v561 = vmax.f32 %v529, 0.0
      %v562 = vmax.f32 %v530, 0.0
      %v563 = vmax.f32 %v531, 0.0
      %v564 = vmax.f32 %v532, 0.0
      %v565 = vmax.f32 %v533, 0.0
      %v566 = vmax.f32 %v534, 0.0
      %v567 = vmax.f32 %v535, 0.0
      %v568 = vmax.f32 %v536, 0.0
      %v569 = vmax.f32 %v537, 0.0
      %v570 = vmax.f32 %v538, 0.0
      %v571 = vmax.f32 %v539, 0.0
      %v572 = vmax.f32 %v540, 0.0
      %v573 = vmax.f32 %v541, 0.0
      %v574 = vmax.f32 %v542, 0.0
      %v575 = vmax.f32 %v543, 0.0
      %v576 = vmax.f32 %v544, 0.0
      %v577 = vmax.f32 %v545, 0.0
      %v578 = vmax.f32 %v546, 0.0
      %v579 = vmax.f32 %v547, 0.0
      %v580 = vmax.f32 %v548, 0.0
      %v581 = vmax.f32 %v549, 0.0
      %v582 = vmax.f32 %v550, 0.0
      %v583 = vmax.f32 %v551, 0.0
      %v584 = vmax.f32 %v552, 0.0
      %v585 = vmax.f32 %v553, 0.0
      %v586 = vpack.c.bf16 %v554, %v554
      %v587 = vpack.c.bf16 %v555, %v555
      %v588 = vpack.c.bf16 %v556, %v556
      %v589 = vpack.c.bf16 %v557, %v557
      %v590 = vpack.c.bf16 %v558, %v558
      %v591 = vpack.c.bf16 %v559, %v559
      %v592 = vpack.c.bf16 %v560, %v560
      %v593 = vpack.c.bf16 %v561, %v561
      %v594 = vpack.c.bf16 %v562, %v562
      %v595 = vpack.c.bf16 %v563, %v563
      %v596 = vpack.c.bf16 %v564, %v564
      %v597 = vpack.c.bf16 %v565, %v565
      %v598 = vpack.c.bf16 %v566, %v566
      %v599 = vpack.c.bf16 %v567, %v567
      %v600 = vpack.c.bf16 %v568, %v568
      %v601 = vpack.c.bf16 %v569, %v569
      %v602 = vpack.c.bf16 %v570, %v570
      %v603 = vpack.c.bf16 %v571, %v571
      %v604 = vpack.c.bf16 %v572, %v572
      %v605 = vpack.c.bf16 %v573, %v573
      %v606 = vpack.c.bf16 %v574, %v574
      %v607 = vpack.c.bf16 %v575, %v575
      %v608 = vpack.c.bf16 %v576, %v576
      %v609 = vpack.c.bf16 %v577, %v577
      %v610 = vpack.c.bf16 %v578, %v578
      %v611 = vpack.c.bf16 %v579, %v579
      %v612 = vpack.c.bf16 %v580, %v580
      %v613 = vpack.c.bf16 %v581, %v581
      %v614 = vpack.c.bf16 %v582, %v582
      %v615 = vpack.c.bf16 %v583, %v583
      %v616 = vpack.c.bf16 %v584, %v584
      %v617 = vpack.c.bf16 %v585, %v585
      %vm618 = vcmask 60416
      %619 = vst.msk [vmem:[%s199] sm:$0xf] %vm618, %v586
      %620 = vst.msk [vmem:[%s199 + $0x4] sm:$0xf] %vm618, %v587
      %621 = vst.msk [vmem:[%s199 + $0x8] sm:$0xf] %vm618, %v588
      %622 = vst.msk [vmem:[%s199 + $0xc] sm:$0xf] %vm618, %v589
      %623 = vst.msk [vmem:[%s199 + $0x10] sm:$0xf] %vm618, %v590
      %624 = vst.msk [vmem:[%s199 + $0x14] sm:$0xf] %vm618, %v591
      %625 = vst.msk [vmem:[%s199 + $0x18] sm:$0xf] %vm618, %v592
      %626 = vst.msk [vmem:[%s199 + $0x1c] sm:$0xf] %vm618, %v593
      %627 = vst.msk [vmem:[%s199 + $0x20] sm:$0xf] %vm618, %v594
      %628 = vst.msk [vmem:[%s199 + $0x24] sm:$0xf] %vm618, %v595
      %629 = vst.msk [vmem:[%s199 + $0x28] sm:$0xf] %vm618, %v596
      %630 = vst.msk [vmem:[%s199 + $0x2c] sm:$0xf] %vm618, %v597
      %631 = vst.msk [vmem:[%s199 + $0x30] sm:$0xf] %vm618, %v598
      %632 = vst.msk [vmem:[%s199 + $0x34] sm:$0xf] %vm618, %v599
      %633 = vst.msk [vmem:[%s199 + $0x38] sm:$0xf] %vm618, %v600
      %634 = vst.msk [vmem:[%s199 + $0x3c] sm:$0xf] %vm618, %v601
      %635 = vst.msk [vmem:[%s199 + $0x40] sm:$0xf] %vm618, %v602
      %636 = vst.msk [vmem:[%s199 + $0x44] sm:$0xf] %vm618, %v603
      %637 = vst.msk [vmem:[%s199 + $0x48] sm:$0xf] %vm618, %v604
      %638 = vst.msk [vmem:[%s199 + $0x4c] sm:$0xf] %vm618, %v605
      %639 = vst.msk [vmem:[%s199 + $0x50] sm:$0xf] %vm618, %v606
      %640 = vst.msk [vmem:[%s199 + $0x54] sm:$0xf] %vm618, %v607
      %641 = vst.msk [vmem:[%s199 + $0x58] sm:$0xf] %vm618, %v608
      %642 = vst.msk [vmem:[%s199 + $0x5c] sm:$0xf] %vm618, %v609
      %643 = vst.msk [vmem:[%s199 + $0x60] sm:$0xf] %vm618, %v610
      %644 = vst.msk [vmem:[%s199 + $0x64] sm:$0xf] %vm618, %v611
      %645 = vst.msk [vmem:[%s199 + $0x68] sm:$0xf] %vm618, %v612
      %646 = vst.msk [vmem:[%s199 + $0x6c] sm:$0xf] %vm618, %v613
      %647 = vst.msk [vmem:[%s199 + $0x70] sm:$0xf] %vm618, %v614
      %648 = vst.msk [vmem:[%s199 + $0x74] sm:$0xf] %vm618, %v615
      %649 = vst.msk [vmem:[%s199 + $0x78] sm:$0xf] %vm618, %v616
      %650 = vst.msk [vmem:[%s199 + $0x7c] sm:$0xf] %vm618, %v617
      %s651 = smul.u32 32, %s15
      %p652 = scmp.lt.s32.totalorder %s651, 63
      %s653 = scalar_select %p652, %s651, 63
      %s654 = smul.addr %s653, 4
      %s655 = scalar_lea.vmem %s4, %s654
      // Predicated region
      $region37: #{res_model_forward.7} parent=35 // pred_check
        %p656 = pneg %p122
      $region38: #{res_model_forward.7} parent=35 // pred_check_branch
        %658 = sbr.rel (%p656) target = $region40
      $region39: #{res_model_forward.7} parent=35 // pred_region
        %s659 = smul.u32 32, %s15
      $region40: #{res_model_forward.7} parent=35 // pred_fallthru
        _
    $region36: #{res_model_forward.7} parent=5 // pred_fallthru
      _
    %p660 = scmp.le.s32.totalorder 2, %s10
    // Predicated region
    $region41: #{res_model_forward.7} parent=5 // pred_check
      %p661 = pneg %p660
    $region42: #{res_model_forward.7} parent=5 // pred_check_branch
      %663 = sbr.rel (%p661) target = $region44
    $region43: #{res_model_forward.7} parent=5 // pred_region
      %s664 = ssub.s32 %s10, 2
      // Predicated region
      $region45: #{res_model_forward.7} parent=43 // pred_check
        %p665 = pneg %p128
      $region46: #{res_model_forward.7} parent=43 // pred_check_branch
        %667 = sbr.rel (%p665) target = $region48
      $region47: #{res_model_forward.7} parent=43 // pred_region
        %s668 = smul.u32 32, %s16
        %p669 = scmp.lt.s32.totalorder %s668, 63
        %s670 = scalar_select %p669, %s668, 63
        %s671 = smul.addr %s670, 4
        %s672 = scalar_lea.vmem %s4, %s671
      $region48: #{res_model_forward.7} parent=43 // pred_fallthru
        _
    $region44: #{res_model_forward.7} parent=5 // pred_fallthru
      _
  $region6: #{res_model_forward.7} parent=0 // loop_footer
    %s14 = sadd.s32 1, %s10
  $region7: #{res_model_forward.7} parent=0 // loop_footer_branch
    %9 = sbr.rel target = $region3
  $region8: #{res_model_forward.7} parent=0 // loop_exit
    _

// kernel: res_model_forward.11
$region0: #{res_model_forward.11}
  #allocation0 [shape = 'u32[]', space=smem, size = 0x4, offset = 0x4, fixed_abs, tag = 'smem constant byte address 0x4 - core index']
  #allocation1 [shape = 'u32[72,128]{1,0:T(1,128)}', space=vmem, size = 0x9000, scoped, tag = 'internal scratch']
  %s0 = inlined_call_operand.vmem [shape: bf16[512,128], index: 0, kind: input, shape index: {}]
  %s1 = inlined_call_operand.vmem [shape: bf16[128,128], index: 1, kind: input, shape index: {}]
  %s2 = inlined_call_operand.vmem [shape: f32[1,128], index: 2, kind: input, shape index: {}]
  %s3 = inlined_call_operand.vmem [shape: f32[1,128], index: 3, kind: input, shape index: {}]
  %s4 = inlined_call_operand.vmem [shape: bf16[512,8], index: 4, kind: input, shape index: {}]
  %s5 = inlined_call_operand.vmem [shape: bf16[512,8], index: 5, kind: output, shape index: {}]
  %s6 = sld [smem:[#allocation0]]
  $region53: #{res_model_forward.11} parent=0
    _
  %s8 = ssub.s32 1, %s6
  %s9 = scalar_select 0, %s8, %s6
  loop: start=0, step=1, limit=4
  $region2: #{res_model_forward.11} parent=0 // loop_pre_header
    _
  $region3: #{res_model_forward.11} parent=0 // loop_header
    %s11 = sphi 0, %s15
    %p12 = scmp.ge.s32.totalorder %s11, 4
    %s21 = sphi 0, %s23
    %s24 = sphi 0, %s21
    %s25 = sphi 0, %s24
    %s41 = sphi 0, %s25
    %s45 = sphi 0, %s45
    %s47 = sphi 0, %s45
    %s48 = sphi 0, %s47
    %s62 = sphi 0, %s48
    %s66 = sphi 0, %s66
    %s68 = sphi 0, %s66
    %s69 = sphi 0, %s68
    %s83 = sphi 0, %s69
    %s87 = sphi 0, %s87
    %s89 = sphi 0, %s87
    %s90 = sphi 0, %s89
    %s104 = sphi 0, %s90
    %s110 = sphi 0, %s112
    %s113 = sphi 0, %s110
    %s114 = sphi 0, %s113
    %s130 = sphi 0, %s114
    %s136 = sphi 0, %s138
    %s139 = sphi 0, %s136
    %s140 = sphi 0, %s139
    %s156 = sphi 0, %s140
  $region4: #{res_model_forward.11} parent=0 // loop_header_branch
    %14 = sbr.rel (%p12) target = $region8
  $region5: #{res_model_forward.11} parent=0 // loop_body
    %s16 = ssub.s32 %s11, 1
    %s17 = ssub.s32 %s11, 2
    %s18 = sadd.s32 %s11, 1
    %s19 = ssub.s32 %s11, %s18
    %p20 = scmp.eq.s32.totalorder %s19, 0
    %s22 = sadd.s32 %s21, 1
    %s23 = scalar_select %p20, %s21, %s22
    %p26 = pneg %p20
    %p27 = scmp.eq.s32.totalorder %s11, 1
    %p28 = por %p26, %p27
    %p29 = scmp.ne.s32.totalorder %s21, %s24
    %p30 = scmp.eq.s32.totalorder %s11, 0
    %p31 = por %p29, %p30
    %p32 = scmp.ne.s32.totalorder %s21, %s24
    %p33 = scmp.eq.s32.totalorder %s16, 1
    %p34 = por %p32, %p33
    %p35 = scmp.ne.s32.totalorder %s24, %s25
    %p36 = scmp.eq.s32.totalorder %s16, 0
    %p37 = por %p35, %p36
    %p38 = scmp.ne.s32.totalorder %s24, %s25
    %p39 = scmp.eq.s32.totalorder %s17, 1
    %p40 = por %p38, %p39
    %p42 = scmp.ne.s32.totalorder %s25, %s41
    %p43 = scmp.eq.s32.totalorder %s17, 0
    %p44 = por %p42, %p43
    %s46 = sadd.s32 %s45, 1
    %p49 = scmp.eq.s32.totalorder %s11, 1
    %p50 = scmp.ne.s32.totalorder %s45, %s47
    %p51 = scmp.eq.s32.totalorder %s11, 0
    %p52 = por %p50, %p51
    %p53 = scmp.ne.s32.totalorder %s45, %s47
    %p54 = scmp.eq.s32.totalorder %s16, 1
    %p55 = por %p53, %p54
    %p56 = scmp.ne.s32.totalorder %s47, %s48
    %p57 = scmp.eq.s32.totalorder %s16, 0
    %p58 = por %p56, %p57
    %p59 = scmp.ne.s32.totalorder %s47, %s48
    %p60 = scmp.eq.s32.totalorder %s17, 1
    %p61 = por %p59, %p60
    %p63 = scmp.ne.s32.totalorder %s48, %s62
    %p64 = scmp.eq.s32.totalorder %s17, 0
    %p65 = por %p63, %p64
    %s67 = sadd.s32 %s66, 1
    %p70 = scmp.eq.s32.totalorder %s11, 1
    %p71 = scmp.ne.s32.totalorder %s66, %s68
    %p72 = scmp.eq.s32.totalorder %s11, 0
    %p73 = por %p71, %p72
    %p74 = scmp.ne.s32.totalorder %s66, %s68
    %p75 = scmp.eq.s32.totalorder %s16, 1
    %p76 = por %p74, %p75
    %p77 = scmp.ne.s32.totalorder %s68, %s69
    %p78 = scmp.eq.s32.totalorder %s16, 0
    %p79 = por %p77, %p78
    %p80 = scmp.ne.s32.totalorder %s68, %s69
    %p81 = scmp.eq.s32.totalorder %s17, 1
    %p82 = por %p80, %p81
    %p84 = scmp.ne.s32.totalorder %s69, %s83
    %p85 = scmp.eq.s32.totalorder %s17, 0
    %p86 = por %p84, %p85
    %s88 = sadd.s32 %s87, 1
    %p91 = scmp.eq.s32.totalorder %s11, 1
    %p92 = scmp.ne.s32.totalorder %s87, %s89
    %p93 = scmp.eq.s32.totalorder %s11, 0
    %p94 = por %p92, %p93
    %p95 = scmp.ne.s32.totalorder %s87, %s89
    %p96 = scmp.eq.s32.totalorder %s16, 1
    %p97 = por %p95, %p96
    %p98 = scmp.ne.s32.totalorder %s89, %s90
    %p99 = scmp.eq.s32.totalorder %s16, 0
    %p100 = por %p98, %p99
    %p101 = scmp.ne.s32.totalorder %s89, %s90
    %p102 = scmp.eq.s32.totalorder %s17, 1
    %p103 = por %p101, %p102
    %p105 = scmp.ne.s32.totalorder %s90, %s104
    %p106 = scmp.eq.s32.totalorder %s17, 0
    %p107 = por %p105, %p106
    %s108 = ssub.s32 %s11, %s18
    %p109 = scmp.eq.s32.totalorder %s108, 0
    %s111 = sadd.s32 %s110, 1
    %s112 = scalar_select %p109, %s110, %s111
    %p115 = pneg %p109
    %p116 = scmp.eq.s32.totalorder %s11, 1
    %p117 = por %p115, %p116
    %p118 = scmp.ne.s32.totalorder %s110, %s113
    %p119 = scmp.eq.s32.totalorder %s11, 0
    %p120 = por %p118, %p119
    %p121 = scmp.ne.s32.totalorder %s110, %s113
    %p122 = scmp.eq.s32.totalorder %s16, 1
    %p123 = por %p121, %p122
    %p124 = scmp.ne.s32.totalorder %s113, %s114
    %p125 = scmp.eq.s32.totalorder %s16, 0
    %p126 = por %p124, %p125
    %p127 = scmp.ne.s32.totalorder %s113, %s114
    %p128 = scmp.eq.s32.totalorder %s17, 1
    %p129 = por %p127, %p128
    %p131 = scmp.ne.s32.totalorder %s114, %s130
    %p132 = scmp.eq.s32.totalorder %s17, 0
    %p133 = por %p131, %p132
    %s134 = ssub.s32 %s11, %s18
    %p135 = scmp.eq.s32.totalorder %s134, 0
    %s137 = sadd.s32 %s136, 1
    %s138 = scalar_select %p135, %s136, %s137
    %p141 = pneg %p135
    %p142 = scmp.eq.s32.totalorder %s11, 1
    %p143 = por %p141, %p142
    %p144 = scmp.ne.s32.totalorder %s136, %s139
    %p145 = scmp.eq.s32.totalorder %s11, 0
    %p146 = por %p144, %p145
    %p147 = scmp.ne.s32.totalorder %s136, %s139
    %p148 = scmp.eq.s32.totalorder %s16, 1
    %p149 = por %p147, %p148
    %p150 = scmp.ne.s32.totalorder %s139, %s140
    %p151 = scmp.eq.s32.totalorder %s16, 0
    %p152 = por %p150, %p151
    %p153 = scmp.ne.s32.totalorder %s139, %s140
    %p154 = scmp.eq.s32.totalorder %s17, 1
    %p155 = por %p153, %p154
    %p157 = scmp.ne.s32.totalorder %s140, %s156
    %p158 = scmp.eq.s32.totalorder %s17, 0
    %p159 = por %p157, %p158
    %p160 = scmp.le.s32.totalorder 1, %s11
    %p161 = scmp.lt.s32.totalorder %s11, 3
    %p162 = pnand %p160, %p161
    %p163 = pneg %p162
    // Predicated region
    $region9: #{res_model_forward.11} parent=5 // pred_check
      _
    $region10: #{res_model_forward.11} parent=5 // pred_check_branch
      %165 = sbr.rel (%p162) target = $region12
    $region11: #{res_model_forward.11} parent=5 // pred_region
      %s166 = ssub.s32 %s11, 1
      // Predicated region
      $region13: #{res_model_forward.11} parent=11 // pred_check
        %p167 = pneg %p58
      $region14: #{res_model_forward.11} parent=11 // pred_check_branch
        %169 = sbr.rel (%p167) target = $region16
      $region15: #{res_model_forward.11} parent=11 // pred_region
        _
      $region16: #{res_model_forward.11} parent=11 // pred_fallthru
        _
      // Predicated region
      $region17: #{res_model_forward.11} parent=11 // pred_check
        %p170 = pneg %p79
      $region18: #{res_model_forward.11} parent=11 // pred_check_branch
        %172 = sbr.rel (%p170) target = $region20
      $region19: #{res_model_forward.11} parent=11 // pred_region
        _
      $region20: #{res_model_forward.11} parent=11 // pred_fallthru
        _
      // Predicated region
      $region21: #{res_model_forward.11} parent=11 // pred_check
        %p173 = pneg %p100
      $region22: #{res_model_forward.11} parent=11 // pred_check_branch
        %175 = sbr.rel (%p173) target = $region24
      $region23: #{res_model_forward.11} parent=11 // pred_region
        _
      $region24: #{res_model_forward.11} parent=11 // pred_fallthru
        _
    $region12: #{res_model_forward.11} parent=5 // pred_fallthru
      _
    %p176 = scmp.lt.s32.totalorder %s11, 2
    // Predicated region
    $region25: #{res_model_forward.11} parent=5 // pred_check
      %p177 = pneg %p176
    $region26: #{res_model_forward.11} parent=5 // pred_check_branch
      %179 = sbr.rel (%p177) target = $region28
    $region27: #{res_model_forward.11} parent=5 // pred_region
      // Predicated region
      $region29: #{res_model_forward.11} parent=27 // pred_check
        %p180 = pneg %p31
      $region30: #{res_model_forward.11} parent=27 // pred_check_branch
        %182 = sbr.rel (%p180) target = $region32
      $region31: #{res_model_forward.11} parent=27 // pred_region
        %s183 = smul.u32 32, %s11
        %p184 = scmp.lt.s32.totalorder %s183, 63
        %s185 = scalar_select %p184, %s183, 63
        %s186 = smul.addr %s185, 4
        %s187 = scalar_lea.vmem %s0, %s186
        %s188 = smul.u32 32, %s11
      $region32: #{res_model_forward.11} parent=27 // pred_fallthru
        _
      // Predicated region
      $region33: #{res_model_forward.11} parent=27 // pred_check
        %p189 = pneg %p120
      $region34: #{res_model_forward.11} parent=27 // pred_check_branch
        %191 = sbr.rel (%p189) target = $region36
      $region35: #{res_model_forward.11} parent=27 // pred_region
        %s192 = smul.u32 32, %s11
        %p193 = scmp.lt.s32.totalorder %s192, 63
        %s194 = scalar_select %p193, %s192, 63
        %s195 = smul.addr %s194, 4
        %s196 = scalar_lea.vmem %s4, %s195
        %s197 = smul.u32 32, %s11
      $region36: #{res_model_forward.11} parent=27 // pred_fallthru
        _
    $region28: #{res_model_forward.11} parent=5 // pred_fallthru
      _
    %p198 = scmp.le.s32.totalorder 1, %s11
    %p199 = scmp.lt.s32.totalorder %s11, 3
    %p200 = pnand %p198, %p199
    %p201 = pneg %p200
    // Predicated region
    $region37: #{res_model_forward.11} parent=5 // pred_check
      _
    $region38: #{res_model_forward.11} parent=5 // pred_check_branch
      %203 = sbr.rel (%p200) target = $region40
    $region39: #{res_model_forward.11} parent=5 // pred_region
      %s204 = ssub.s32 %s11, 1
      %s205 = smul.u32 32, %s16
      %p206 = scmp.lt.s32.totalorder %s205, 63
      %s207 = scalar_select %p206, %s205, 63
      %s208 = smul.addr %s207, 4
      %s209 = scalar_lea.vmem %s0, %s208
      %p210 = pneg %p37
      %p211 = pneg %p34
      %p212 = pneg %p58
      %p213 = pneg %p55
      %p214 = pneg %p79
      %p215 = pneg %p76
      %p216 = pneg %p100
      %p217 = pneg %p97
      %s218 = smul.u32 32, %s16
      %p219 = scmp.lt.s32.totalorder %s218, 63
      %s220 = scalar_select %p219, %s218, 63
      %s221 = smul.addr %s220, 4
      %s222 = scalar_lea.vmem %s4, %s221
      %p223 = pneg %p126
      %p224 = pneg %p123
      %p225 = pneg %p152
      %p226 = pneg %p149
      %s227 = smul.u32 32, %s16
      %p228 = scmp.lt.s32.totalorder %s227, 63
      %s229 = scalar_select %p228, %s227, 63
      %s230 = smul.addr %s229, 4
      %s231 = scalar_lea.vmem %s5, %s230
      %s232 = smul.u32 32, %s16
      %p233 = scmp.lt.s32.totalorder %s232, 63
      %s234 = scalar_select %p233, %s232, 63
      %s235 = smul.addr %s234, 4
      %s236 = scalar_lea.vmem %s0, %s235
      %s237 = smul.u32 32, %s16
      %s238 = smul.u32 32, %s16
      %p239 = scmp.lt.s32.totalorder %s238, 63
      %s240 = scalar_select %p239, %s238, 63
      %s241 = smul.addr %s240, 4
      %s242 = scalar_lea.vmem %s4, %s241
      %s243 = smul.u32 32, %s16
      %s244 = smul.u32 32, %s16
      %p245 = scmp.lt.s32.totalorder %s244, 63
      %s246 = scalar_select %p245, %s244, 63
      %s247 = smul.addr %s246, 4
      %s248 = scalar_lea.vmem %s5, %s247
      %s249 = smul.u32 32, %s16
      %v250 = vld [vmem:[%s236] sm:$0xf]
      %v251 = vld [vmem:[%s236 + $0x4] sm:$0xf]
      %v252 = vld [vmem:[%s236 + $0x8] sm:$0xf]
      %v253 = vld [vmem:[%s236 + $0xc] sm:$0xf]
      %v254 = vld [vmem:[%s236 + $0x10] sm:$0xf]
      %v255 = vld [vmem:[%s236 + $0x14] sm:$0xf]
      %v256 = vld [vmem:[%s236 + $0x18] sm:$0xf]
      %v257 = vld [vmem:[%s236 + $0x1c] sm:$0xf]
      %v258 = vld [vmem:[%s236 + $0x20] sm:$0xf]
      %v259 = vld [vmem:[%s236 + $0x24] sm:$0xf]
      %v260 = vld [vmem:[%s236 + $0x28] sm:$0xf]
      %v261 = vld [vmem:[%s236 + $0x2c] sm:$0xf]
      %v262 = vld [vmem:[%s236 + $0x30] sm:$0xf]
      %v263 = vld [vmem:[%s236 + $0x34] sm:$0xf]
      %v264 = vld [vmem:[%s236 + $0x38] sm:$0xf]
      %v265 = vld [vmem:[%s236 + $0x3c] sm:$0xf]
      %v266 = vld [vmem:[%s236 + $0x40] sm:$0xf]
      %v267 = vld [vmem:[%s236 + $0x44] sm:$0xf]
      %v268 = vld [vmem:[%s236 + $0x48] sm:$0xf]
      %v269 = vld [vmem:[%s236 + $0x4c] sm:$0xf]
      %v270 = vld [vmem:[%s236 + $0x50] sm:$0xf]
      %v271 = vld [vmem:[%s236 + $0x54] sm:$0xf]
      %v272 = vld [vmem:[%s236 + $0x58] sm:$0xf]
      %v273 = vld [vmem:[%s236 + $0x5c] sm:$0xf]
      %v274 = vld [vmem:[%s236 + $0x60] sm:$0xf]
      %v275 = vld [vmem:[%s236 + $0x64] sm:$0xf]
      %v276 = vld [vmem:[%s236 + $0x68] sm:$0xf]
      %v277 = vld [vmem:[%s236 + $0x6c] sm:$0xf]
      %v278 = vld [vmem:[%s236 + $0x70] sm:$0xf]
      %v279 = vld [vmem:[%s236 + $0x74] sm:$0xf]
      %v280 = vld [vmem:[%s236 + $0x78] sm:$0xf]
      %v281 = vld [vmem:[%s236 + $0x7c] sm:$0xf]
      %v282 = vld [vmem:[%s1] sm:$0xf]
      %v283 = vld [vmem:[%s1 + $0x4] sm:$0xf]
      %v284 = vld [vmem:[%s1 + $0x8] sm:$0xf]
      %v285 = vld [vmem:[%s1 + $0xc] sm:$0xf]
      %v286 = vld [vmem:[%s1 + $0x10] sm:$0xf]
      %v287 = vld [vmem:[%s1 + $0x14] sm:$0xf]
      %v288 = vld [vmem:[%s1 + $0x18] sm:$0xf]
      %v289 = vld [vmem:[%s1 + $0x1c] sm:$0xf]
      %v290 = vld [vmem:[%s1 + $0x20] sm:$0xf]
      %v291 = vld [vmem:[%s1 + $0x24] sm:$0xf]
      %v292 = vld [vmem:[%s1 + $0x28] sm:$0xf]
      %v293 = vld [vmem:[%s1 + $0x2c] sm:$0xf]
      %v294 = vld [vmem:[%s1 + $0x30] sm:$0xf]
      %v295 = vld [vmem:[%s1 + $0x34] sm:$0xf]
      %v296 = vld [vmem:[%s1 + $0x38] sm:$0xf]
      %v297 = vld [vmem:[%s1 + $0x3c] sm:$0xf]
      %v330 = vunpack.c.l.b16 %v250
      %v331 = vunpack.c.l.b16 %v251
      %v332 = vunpack.c.l.b16 %v252
      %v333 = vunpack.c.l.b16 %v253
      %v334 = vunpack.c.l.b16 %v254
      %v335 = vunpack.c.l.b16 %v255
      %v336 = vunpack.c.l.b16 %v256
      %v337 = vunpack.c.l.b16 %v257
      %v338 = vunpack.c.l.b16 %v258
      %v339 = vunpack.c.l.b16 %v259
      %v340 = vunpack.c.l.b16 %v260
      %v341 = vunpack.c.l.b16 %v261
      %v342 = vunpack.c.l.b16 %v262
      %v343 = vunpack.c.l.b16 %v263
      %v344 = vunpack.c.l.b16 %v264
      %v345 = vunpack.c.l.b16 %v265
      %v346 = vunpack.c.l.b16 %v266
      %v347 = vunpack.c.l.b16 %v267
      %v348 = vunpack.c.l.b16 %v268
      %v349 = vunpack.c.l.b16 %v269
      %v350 = vunpack.c.l.b16 %v270
      %v351 = vunpack.c.l.b16 %v271
      %v352 = vunpack.c.l.b16 %v272
      %v353 = vunpack.c.l.b16 %v273
      %v354 = vunpack.c.l.b16 %v274
      %v355 = vunpack.c.l.b16 %v275
      %v356 = vunpack.c.l.b16 %v276
      %v357 = vunpack.c.l.b16 %v277
      %v358 = vunpack.c.l.b16 %v278
      %v359 = vunpack.c.l.b16 %v279
      %v360 = vunpack.c.l.b16 %v280
      %v361 = vunpack.c.l.b16 %v281
      %v362 = vpack.c.b16 %v331, %v330
      %v363 = vpack.c.b16 %v333, %v332
      %v364 = vpack.c.b16 %v335, %v334
      %v365 = vpack.c.b16 %v337, %v336
      %v366 = vpack.c.b16 %v339, %v338
      %v367 = vpack.c.b16 %v341, %v340
      %v368 = vpack.c.b16 %v343, %v342
      %v369 = vpack.c.b16 %v345, %v344
      %v370 = vpack.c.b16 %v347, %v346
      %v371 = vpack.c.b16 %v349, %v348
      %v372 = vpack.c.b16 %v351, %v350
      %v373 = vpack.c.b16 %v353, %v352
      %v374 = vpack.c.b16 %v355, %v354
      %v375 = vpack.c.b16 %v357, %v356
      %v376 = vpack.c.b16 %v359, %v358
      %v377 = vpack.c.b16 %v361, %v360
      %v410 = vunpack.c.l.b16 %v282
      %v411 = vunpack.c.l.b16 %v283
      %v412 = vunpack.c.l.b16 %v284
      %v413 = vunpack.c.l.b16 %v285
      %v414 = vunpack.c.l.b16 %v286
      %v415 = vunpack.c.l.b16 %v287
      %v416 = vunpack.c.l.b16 %v288
      %v417 = vunpack.c.l.b16 %v289
      %v418 = vunpack.c.l.b16 %v290
      %v419 = vunpack.c.l.b16 %v291
      %v420 = vunpack.c.l.b16 %v292
      %v421 = vunpack.c.l.b16 %v293
      %v422 = vunpack.c.l.b16 %v294
      %v423 = vunpack.c.l.b16 %v295
      %v424 = vunpack.c.l.b16 %v296
      %v425 = vunpack.c.l.b16 %v297
      %v426 = vpack.c.b16 %v411, %v410
      %v427 = vpack.c.b16 %v413, %v412
      %v428 = vpack.c.b16 %v415, %v414
      %v429 = vpack.c.b16 %v417, %v416
      %v430 = vpack.c.b16 %v419, %v418
      %v431 = vpack.c.b16 %v421, %v420
      %v432 = vpack.c.b16 %v423, %v422
      %v433 = vpack.c.b16 %v425, %v424
      %442 = vmatpush.bf16.msra.mxu0 %v433
      %443 = vmatpush.bf16.msra.mxu0 %v432
      %444 = vmatpush.bf16.msra.mxu0 %v431
      %445 = vmatpush.bf16.msra.mxu0 %v430
      %446 = vmatpush.bf16.msra.mxu0 %v429
      %447 = vmatpush.bf16.msra.mxu0 %v428
      %448 = vmatpush.bf16.msra.mxu0 %v427
      %449 = vmatpush.bf16.msra.mxu0 %v426
      %450 = vmatmul.bf16.gmra.mxu0 %v362
      %v451 = vpop.f32.mrf.mxu0
      %v452 = vadd.f32 0.0, %v451
      %v453 = vpop.f32.mrf.mxu0
      %v454 = vadd.f32 0.0, %v453
      %455 = vmatmul.bf16.gmra.mxu0 %v363
      %v456 = vpop.f32.mrf.mxu0
      %v457 = vadd.f32 0.0, %v456
      %v458 = vpop.f32.mrf.mxu0
      %v459 = vadd.f32 0.0, %v458
      %460 = vmatmul.bf16.gmra.mxu0 %v364
      %v461 = vpop.f32.mrf.mxu0
      %v462 = vadd.f32 0.0, %v461
      %v463 = vpop.f32.mrf.mxu0
      %v464 = vadd.f32 0.0, %v463
      %465 = vmatmul.bf16.gmra.mxu0 %v365
      %v466 = vpop.f32.mrf.mxu0
      %v467 = vadd.f32 0.0, %v466
      %v468 = vpop.f32.mrf.mxu0
      %v469 = vadd.f32 0.0, %v468
      %470 = vmatmul.bf16.gmra.mxu0 %v366
      %v471 = vpop.f32.mrf.mxu0
      %v472 = vadd.f32 0.0, %v471
      %v473 = vpop.f32.mrf.mxu0
      %v474 = vadd.f32 0.0, %v473
      %475 = vmatmul.bf16.gmra.mxu0 %v367
      %v476 = vpop.f32.mrf.mxu0
      %v477 = vadd.f32 0.0, %v476
      %v478 = vpop.f32.mrf.mxu0
      %v479 = vadd.f32 0.0, %v478
      %480 = vmatmul.bf16.gmra.mxu0 %v368
      %v481 = vpop.f32.mrf.mxu0
      %v482 = vadd.f32 0.0, %v481
      %v483 = vpop.f32.mrf.mxu0
      %v484 = vadd.f32 0.0, %v483
      %485 = vmatmul.bf16.gmra.mxu0 %v369
      %v486 = vpop.f32.mrf.mxu0
      %v487 = vadd.f32 0.0, %v486
      %v488 = vpop.f32.mrf.mxu0
      %v489 = vadd.f32 0.0, %v488
      %490 = vmatmul.bf16.gmra.mxu0 %v370
      %v491 = vpop.f32.mrf.mxu0
      %v492 = vadd.f32 0.0, %v491
      %v493 = vpop.f32.mrf.mxu0
      %v494 = vadd.f32 0.0, %v493
      %495 = vmatmul.bf16.gmra.mxu0 %v371
      %v496 = vpop.f32.mrf.mxu0
      %v497 = vadd.f32 0.0, %v496
      %v498 = vpop.f32.mrf.mxu0
      %v499 = vadd.f32 0.0, %v498
      %500 = vmatmul.bf16.gmra.mxu0 %v372
      %v501 = vpop.f32.mrf.mxu0
      %v502 = vadd.f32 0.0, %v501
      %v503 = vpop.f32.mrf.mxu0
      %v504 = vadd.f32 0.0, %v503
      %505 = vmatmul.bf16.gmra.mxu0 %v373
      %v506 = vpop.f32.mrf.mxu0
      %v507 = vadd.f32 0.0, %v506
      %v508 = vpop.f32.mrf.mxu0
      %v509 = vadd.f32 0.0, %v508
      %510 = vmatmul.bf16.gmra.mxu0 %v374
      %v511 = vpop.f32.mrf.mxu0
      %v512 = vadd.f32 0.0, %v511
      %v513 = vpop.f32.mrf.mxu0
      %v514 = vadd.f32 0.0, %v513
      %515 = vmatmul.bf16.gmra.mxu0 %v375
      %v516 = vpop.f32.mrf.mxu0
      %v517 = vadd.f32 0.0, %v516
      %v518 = vpop.f32.mrf.mxu0
      %v519 = vadd.f32 0.0, %v518
      %520 = vmatmul.bf16.gmra.mxu0 %v376
      %v521 = vpop.f32.mrf.mxu0
      %v522 = vadd.f32 0.0, %v521
      %v523 = vpop.f32.mrf.mxu0
      %v524 = vadd.f32 0.0, %v523
      %525 = vmatmul.bf16.gmra.mxu0 %v377
      %v526 = vpop.f32.mrf.mxu0
      %v527 = vadd.f32 0.0, %v526
      %v528 = vpop.f32.mrf.mxu0
      %v529 = vadd.f32 0.0, %v528
      %530 = vdwg.mxu0
      %v531 = vld [vmem:[%s2] sm:$0x1]
      %v533 = vperm.slane %v531, 0
      %v535 = vmul.f32 %v452, %v533
      %v536 = vmul.f32 %v454, %v533
      %v537 = vmul.f32 %v457, %v533
      %v538 = vmul.f32 %v459, %v533
      %v539 = vmul.f32 %v462, %v533
      %v540 = vmul.f32 %v464, %v533
      %v541 = vmul.f32 %v467, %v533
      %v542 = vmul.f32 %v469, %v533
      %v543 = vmul.f32 %v472, %v533
      %v544 = vmul.f32 %v474, %v533
      %v545 = vmul.f32 %v477, %v533
      %v546 = vmul.f32 %v479, %v533
      %v547 = vmul.f32 %v482, %v533
      %v548 = vmul.f32 %v484, %v533
      %v549 = vmul.f32 %v487, %v533
      %v550 = vmul.f32 %v489, %v533
      %v551 = vmul.f32 %v492, %v533
      %v552 = vmul.f32 %v494, %v533
      %v553 = vmul.f32 %v497, %v533
      %v554 = vmul.f32 %v499, %v533
      %v555 = vmul.f32 %v502, %v533
      %v556 = vmul.f32 %v504, %v533
      %v557 = vmul.f32 %v507, %v533
      %v558 = vmul.f32 %v509, %v533
      %v559 = vmul.f32 %v512, %v533
      %v560 = vmul.f32 %v514, %v533
      %v561 = vmul.f32 %v517, %v533
      %v562 = vmul.f32 %v519, %v533
      %v563 = vmul.f32 %v522, %v533
      %v564 = vmul.f32 %v524, %v533
      %v565 = vmul.f32 %v527, %v533
      %v566 = vmul.f32 %v529, %v533
      %v567 = vld [vmem:[%s3] sm:$0x1]
      %v569 = vperm.slane %v567, 0
      %v571 = vadd.f32 %v535, %v569
      %v572 = vadd.f32 %v536, %v569
      %v573 = vadd.f32 %v537, %v569
      %v574 = vadd.f32 %v538, %v569
      %v575 = vadd.f32 %v539, %v569
      %v576 = vadd.f32 %v540, %v569
      %v577 = vadd.f32 %v541, %v569
      %v578 = vadd.f32 %v542, %v569
      %v579 = vadd.f32 %v543, %v569
      %v580 = vadd.f32 %v544, %v569
      %v581 = vadd.f32 %v545, %v569
      %v582 = vadd.f32 %v546, %v569
      %v583 = vadd.f32 %v547, %v569
      %v584 = vadd.f32 %v548, %v569
      %v585 = vadd.f32 %v549, %v569
      %v586 = vadd.f32 %v550, %v569
      %v587 = vadd.f32 %v551, %v569
      %v588 = vadd.f32 %v552, %v569
      %v589 = vadd.f32 %v553, %v569
      %v590 = vadd.f32 %v554, %v569
      %v591 = vadd.f32 %v555, %v569
      %v592 = vadd.f32 %v556, %v569
      %v593 = vadd.f32 %v557, %v569
      %v594 = vadd.f32 %v558, %v569
      %v595 = vadd.f32 %v559, %v569
      %v596 = vadd.f32 %v560, %v569
      %v597 = vadd.f32 %v561, %v569
      %v598 = vadd.f32 %v562, %v569
      %v599 = vadd.f32 %v563, %v569
      %v600 = vadd.f32 %v564, %v569
      %v601 = vadd.f32 %v565, %v569
      %v602 = vadd.f32 %v566, %v569
      %v603 = vld [vmem:[%s242] sm:$0xf]
      %v604 = vld [vmem:[%s242 + $0x4] sm:$0xf]
      %v605 = vld [vmem:[%s242 + $0x8] sm:$0xf]
      %v606 = vld [vmem:[%s242 + $0xc] sm:$0xf]
      %v607 = vld [vmem:[%s242 + $0x10] sm:$0xf]
      %v608 = vld [vmem:[%s242 + $0x14] sm:$0xf]
      %v609 = vld [vmem:[%s242 + $0x18] sm:$0xf]
      %v610 = vld [vmem:[%s242 + $0x1c] sm:$0xf]
      %v611 = vld [vmem:[%s242 + $0x20] sm:$0xf]
      %v612 = vld [vmem:[%s242 + $0x24] sm:$0xf]
      %v613 = vld [vmem:[%s242 + $0x28] sm:$0xf]
      %v614 = vld [vmem:[%s242 + $0x2c] sm:$0xf]
      %v615 = vld [vmem:[%s242 + $0x30] sm:$0xf]
      %v616 = vld [vmem:[%s242 + $0x34] sm:$0xf]
      %v617 = vld [vmem:[%s242 + $0x38] sm:$0xf]
      %v618 = vld [vmem:[%s242 + $0x3c] sm:$0xf]
      %v619 = vld [vmem:[%s242 + $0x40] sm:$0xf]
      %v620 = vld [vmem:[%s242 + $0x44] sm:$0xf]
      %v621 = vld [vmem:[%s242 + $0x48] sm:$0xf]
      %v622 = vld [vmem:[%s242 + $0x4c] sm:$0xf]
      %v623 = vld [vmem:[%s242 + $0x50] sm:$0xf]
      %v624 = vld [vmem:[%s242 + $0x54] sm:$0xf]
      %v625 = vld [vmem:[%s242 + $0x58] sm:$0xf]
      %v626 = vld [vmem:[%s242 + $0x5c] sm:$0xf]
      %v627 = vld [vmem:[%s242 + $0x60] sm:$0xf]
      %v628 = vld [vmem:[%s242 + $0x64] sm:$0xf]
      %v629 = vld [vmem:[%s242 + $0x68] sm:$0xf]
      %v630 = vld [vmem:[%s242 + $0x6c] sm:$0xf]
      %v631 = vld [vmem:[%s242 + $0x70] sm:$0xf]
      %v632 = vld [vmem:[%s242 + $0x74] sm:$0xf]
      %v633 = vld [vmem:[%s242 + $0x78] sm:$0xf]
      %v634 = vld [vmem:[%s242 + $0x7c] sm:$0xf]
      %v635 = vunpack.c.l.bf16 %v603
      %v636 = vunpack.c.l.bf16 %v604
      %v637 = vunpack.c.l.bf16 %v605
      %v638 = vunpack.c.l.bf16 %v606
      %v639 = vunpack.c.l.bf16 %v607
      %v640 = vunpack.c.l.bf16 %v608
      %v641 = vunpack.c.l.bf16 %v609
      %v642 = vunpack.c.l.bf16 %v610
      %v643 = vunpack.c.l.bf16 %v611
      %v644 = vunpack.c.l.bf16 %v612
      %v645 = vunpack.c.l.bf16 %v613
      %v646 = vunpack.c.l.bf16 %v614
      %v647 = vunpack.c.l.bf16 %v615
      %v648 = vunpack.c.l.bf16 %v616
      %v649 = vunpack.c.l.bf16 %v617
      %v650 = vunpack.c.l.bf16 %v618
      %v651 = vunpack.c.l.bf16 %v619
      %v652 = vunpack.c.l.bf16 %v620
      %v653 = vunpack.c.l.bf16 %v621
      %v654 = vunpack.c.l.bf16 %v622
      %v655 = vunpack.c.l.bf16 %v623
      %v656 = vunpack.c.l.bf16 %v624
      %v657 = vunpack.c.l.bf16 %v625
      %v658 = vunpack.c.l.bf16 %v626
      %v659 = vunpack.c.l.bf16 %v627
      %v660 = vunpack.c.l.bf16 %v628
      %v661 = vunpack.c.l.bf16 %v629
      %v662 = vunpack.c.l.bf16 %v630
      %v663 = vunpack.c.l.bf16 %v631
      %v664 = vunpack.c.l.bf16 %v632
      %v665 = vunpack.c.l.bf16 %v633
      %v666 = vunpack.c.l.bf16 %v634
      %v667 = vadd.f32 %v571, %v635
      %v668 = vadd.f32 %v572, %v636
      %v669 = vadd.f32 %v573, %v637
      %v670 = vadd.f32 %v574, %v638
      %v671 = vadd.f32 %v575, %v639
      %v672 = vadd.f32 %v576, %v640
      %v673 = vadd.f32 %v577, %v641
      %v674 = vadd.f32 %v578, %v642
      %v675 = vadd.f32 %v579, %v643
      %v676 = vadd.f32 %v580, %v644
      %v677 = vadd.f32 %v581, %v645
      %v678 = vadd.f32 %v582, %v646
      %v679 = vadd.f32 %v583, %v647
      %v680 = vadd.f32 %v584, %v648
      %v681 = vadd.f32 %v585, %v649
      %v682 = vadd.f32 %v586, %v650
      %v683 = vadd.f32 %v587, %v651
      %v684 = vadd.f32 %v588, %v652
      %v685 = vadd.f32 %v589, %v653
      %v686 = vadd.f32 %v590, %v654
      %v687 = vadd.f32 %v591, %v655
      %v688 = vadd.f32 %v592, %v656
      %v689 = vadd.f32 %v593, %v657
      %v690 = vadd.f32 %v594, %v658
      %v691 = vadd.f32 %v595, %v659
      %v692 = vadd.f32 %v596, %v660
      %v693 = vadd.f32 %v597, %v661
      %v694 = vadd.f32 %v598, %v662
      %v695 = vadd.f32 %v599, %v663
      %v696 = vadd.f32 %v600, %v664
      %v697 = vadd.f32 %v601, %v665
      %v698 = vadd.f32 %v602, %v666
      %v699 = vmax.f32 %v667, 0.0
      %v700 = vmax.f32 %v668, 0.0
      %v701 = vmax.f32 %v669, 0.0
      %v702 = vmax.f32 %v670, 0.0
      %v703 = vmax.f32 %v671, 0.0
      %v704 = vmax.f32 %v672, 0.0
      %v705 = vmax.f32 %v673, 0.0
      %v706 = vmax.f32 %v674, 0.0
      %v707 = vmax.f32 %v675, 0.0
      %v708 = vmax.f32 %v676, 0.0
      %v709 = vmax.f32 %v677, 0.0
      %v710 = vmax.f32 %v678, 0.0
      %v711 = vmax.f32 %v679, 0.0
      %v712 = vmax.f32 %v680, 0.0
      %v713 = vmax.f32 %v681, 0.0
      %v714 = vmax.f32 %v682, 0.0
      %v715 = vmax.f32 %v683, 0.0
      %v716 = vmax.f32 %v684, 0.0
      %v717 = vmax.f32 %v685, 0.0
      %v718 = vmax.f32 %v686, 0.0
      %v719 = vmax.f32 %v687, 0.0
      %v720 = vmax.f32 %v688, 0.0
      %v721 = vmax.f32 %v689, 0.0
      %v722 = vmax.f32 %v690, 0.0
      %v723 = vmax.f32 %v691, 0.0
      %v724 = vmax.f32 %v692, 0.0
      %v725 = vmax.f32 %v693, 0.0
      %v726 = vmax.f32 %v694, 0.0
      %v727 = vmax.f32 %v695, 0.0
      %v728 = vmax.f32 %v696, 0.0
      %v729 = vmax.f32 %v697, 0.0
      %v730 = vmax.f32 %v698, 0.0
      %v731 = vpack.c.bf16 %v699, %v699
      %v732 = vpack.c.bf16 %v700, %v700
      %v733 = vpack.c.bf16 %v701, %v701
      %v734 = vpack.c.bf16 %v702, %v702
      %v735 = vpack.c.bf16 %v703, %v703
      %v736 = vpack.c.bf16 %v704, %v704
      %v737 = vpack.c.bf16 %v705, %v705
      %v738 = vpack.c.bf16 %v706, %v706
      %v739 = vpack.c.bf16 %v707, %v707
      %v740 = vpack.c.bf16 %v708, %v708
      %v741 = vpack.c.bf16 %v709, %v709
      %v742 = vpack.c.bf16 %v710, %v710
      %v743 = vpack.c.bf16 %v711, %v711
      %v744 = vpack.c.bf16 %v712, %v712
      %v745 = vpack.c.bf16 %v713, %v713
      %v746 = vpack.c.bf16 %v714, %v714
      %v747 = vpack.c.bf16 %v715, %v715
      %v748 = vpack.c.bf16 %v716, %v716
      %v749 = vpack.c.bf16 %v717, %v717
      %v750 = vpack.c.bf16 %v718, %v718
      %v751 = vpack.c.bf16 %v719, %v719
      %v752 = vpack.c.bf16 %v720, %v720
      %v753 = vpack.c.bf16 %v721, %v721
      %v754 = vpack.c.bf16 %v722, %v722
      %v755 = vpack.c.bf16 %v723, %v723
      %v756 = vpack.c.bf16 %v724, %v724
      %v757 = vpack.c.bf16 %v725, %v725
      %v758 = vpack.c.bf16 %v726, %v726
      %v759 = vpack.c.bf16 %v727, %v727
      %v760 = vpack.c.bf16 %v728, %v728
      %v761 = vpack.c.bf16 %v729, %v729
      %v762 = vpack.c.bf16 %v730, %v730
      %vm763 = vcmask 60416
      %764 = vst.msk [vmem:[%s248] sm:$0xf] %vm763, %v731
      %765 = vst.msk [vmem:[%s248 + $0x4] sm:$0xf] %vm763, %v732
      %766 = vst.msk [vmem:[%s248 + $0x8] sm:$0xf] %vm763, %v733
      %767 = vst.msk [vmem:[%s248 + $0xc] sm:$0xf] %vm763, %v734
      %768 = vst.msk [vmem:[%s248 + $0x10] sm:$0xf] %vm763, %v735
      %769 = vst.msk [vmem:[%s248 + $0x14] sm:$0xf] %vm763, %v736
      %770 = vst.msk [vmem:[%s248 + $0x18] sm:$0xf] %vm763, %v737
      %771 = vst.msk [vmem:[%s248 + $0x1c] sm:$0xf] %vm763, %v738
      %772 = vst.msk [vmem:[%s248 + $0x20] sm:$0xf] %vm763, %v739
      %773 = vst.msk [vmem:[%s248 + $0x24] sm:$0xf] %vm763, %v740
      %774 = vst.msk [vmem:[%s248 + $0x28] sm:$0xf] %vm763, %v741
      %775 = vst.msk [vmem:[%s248 + $0x2c] sm:$0xf] %vm763, %v742
      %776 = vst.msk [vmem:[%s248 + $0x30] sm:$0xf] %vm763, %v743
      %777 = vst.msk [vmem:[%s248 + $0x34] sm:$0xf] %vm763, %v744
      %778 = vst.msk [vmem:[%s248 + $0x38] sm:$0xf] %vm763, %v745
      %779 = vst.msk [vmem:[%s248 + $0x3c] sm:$0xf] %vm763, %v746
      %780 = vst.msk [vmem:[%s248 + $0x40] sm:$0xf] %vm763, %v747
      %781 = vst.msk [vmem:[%s248 + $0x44] sm:$0xf] %vm763, %v748
      %782 = vst.msk [vmem:[%s248 + $0x48] sm:$0xf] %vm763, %v749
      %783 = vst.msk [vmem:[%s248 + $0x4c] sm:$0xf] %vm763, %v750
      %784 = vst.msk [vmem:[%s248 + $0x50] sm:$0xf] %vm763, %v751
      %785 = vst.msk [vmem:[%s248 + $0x54] sm:$0xf] %vm763, %v752
      %786 = vst.msk [vmem:[%s248 + $0x58] sm:$0xf] %vm763, %v753
      %787 = vst.msk [vmem:[%s248 + $0x5c] sm:$0xf] %vm763, %v754
      %788 = vst.msk [vmem:[%s248 + $0x60] sm:$0xf] %vm763, %v755
      %789 = vst.msk [vmem:[%s248 + $0x64] sm:$0xf] %vm763, %v756
      %790 = vst.msk [vmem:[%s248 + $0x68] sm:$0xf] %vm763, %v757
      %791 = vst.msk [vmem:[%s248 + $0x6c] sm:$0xf] %vm763, %v758
      %792 = vst.msk [vmem:[%s248 + $0x70] sm:$0xf] %vm763, %v759
      %793 = vst.msk [vmem:[%s248 + $0x74] sm:$0xf] %vm763, %v760
      %794 = vst.msk [vmem:[%s248 + $0x78] sm:$0xf] %vm763, %v761
      %795 = vst.msk [vmem:[%s248 + $0x7c] sm:$0xf] %vm763, %v762
      %s796 = smul.u32 32, %s16
      %p797 = scmp.lt.s32.totalorder %s796, 63
      %s798 = scalar_select %p797, %s796, 63
      %s799 = smul.addr %s798, 4
      %s800 = scalar_lea.vmem %s5, %s799
      // Predicated region
      $region41: #{res_model_forward.11} parent=39 // pred_check
        %p801 = pneg %p149
      $region42: #{res_model_forward.11} parent=39 // pred_check_branch
        %803 = sbr.rel (%p801) target = $region44
      $region43: #{res_model_forward.11} parent=39 // pred_region
        %s804 = smul.u32 32, %s16
      $region44: #{res_model_forward.11} parent=39 // pred_fallthru
        _
    $region40: #{res_model_forward.11} parent=5 // pred_fallthru
      _
    %p805 = scmp.le.s32.totalorder 2, %s11
    // Predicated region
    $region45: #{res_model_forward.11} parent=5 // pred_check
      %p806 = pneg %p805
    $region46: #{res_model_forward.11} parent=5 // pred_check_branch
      %808 = sbr.rel (%p806) target = $region48
    $region47: #{res_model_forward.11} parent=5 // pred_region
      %s809 = ssub.s32 %s11, 2
      // Predicated region
      $region49: #{res_model_forward.11} parent=47 // pred_check
        %p810 = pneg %p155
      $region50: #{res_model_forward.11} parent=47 // pred_check_branch
        %812 = sbr.rel (%p810) target = $region52
      $region51: #{res_model_forward.11} parent=47 // pred_region
        %s813 = smul.u32 32, %s17
        %p814 = scmp.lt.s32.totalorder %s813, 63
        %s815 = scalar_select %p814, %s813, 63
        %s816 = smul.addr %s815, 4
        %s817 = scalar_lea.vmem %s5, %s816
      $region52: #{res_model_forward.11} parent=47 // pred_fallthru
        _
    $region48: #{res_model_forward.11} parent=5 // pred_fallthru
      _
  $region6: #{res_model_forward.11} parent=0 // loop_footer
    %s15 = sadd.s32 1, %s11
  $region7: #{res_model_forward.11} parent=0 // loop_footer_branch
    %10 = sbr.rel target = $region3
  $region8: #{res_model_forward.11} parent=0 // loop_exit
    _

</llo_original>
